<compile_context>
chip_gen: v7x
topology: tpu7x:2x2x1
jax: 0.10.0
libtpu: 0.0.40
codegen_flags: <defaults>
</compile_context>

<pallas_src>
from functools import partial

import jax
import jax.numpy as jnp
from jax import lax
from jax.experimental import pallas as pl
from jax.experimental.pallas import tpu as pltpu


def _conv_block_kernel(x_ref, top_ref, bot_ref, dw_ref, b1_ref, pw_ref, b2_ref, o_ref,
                       *, C):
    # x_ref  : (1, TH, W*C)    lane-packed row tile (NHWC with W folded into lanes);
    #                          read once, reused for the residual.
    # top_ref: (1, 1, 1, W*C)  row directly above the tile (clamped at the image edge)
    # bot_ref: (1, 1, 1, W*C)  row directly below the tile (clamped at the image edge)
    # dw_ref : (3, 3, W*C)     depthwise weights, BN1 scale folded in, tiled along W
    # b1_ref : (1, W*C)        folded depthwise bias + BN1 shift, tiled along W
    # pw_ref : (W*C, W*C)      block-diagonal 1x1-conv weights, BN2 scale folded in
    # b2_ref : (1, W*C)        folded pointwise bias + BN2 shift, tiled along W
    # o_ref  : (1, TH, W*C)
    _, TH, WC = x_ref.shape
    t = pl.program_id(1)
    nt = pl.num_programs(1)

    xb = x_ref[0]                       # (TH, WC): single HBM-tile read, residual reuse
    dwv = dw_ref[...]                   # (3, 3, WC): weights loaded once per step
    b1 = b1_ref[0]                      # (WC,)
    b2 = b2_ref[0]                      # (WC,)

    zcol = jnp.zeros((TH, C), jnp.float32)   # zero column shifted in by the kw taps

    def row_taps(rows, kh):
        # kw taps as +-C lane shifts with zero padding shifted in (lane/XLU work, not
        # misaligned sublane slices); the boundary columns are handled structurally.
        left = jnp.concatenate([zcol, rows[:, :WC - C]], axis=1)   # x[., w-1, .]
        right = jnp.concatenate([rows[:, C:], zcol], axis=1)       # x[., w+1, .]
        return left * dwv[kh, 0] + rows * dwv[kh, 1] + right * dwv[kh, 2]

    # Center rows first; the shifted up/down row sets are built and consumed in turn.
    acc = row_taps(xb, 1)

    top = top_ref[0, 0] * jnp.where(t > 0, 1.0, 0.0)        # (1, WC); zero pad at top edge
    x_up = jnp.concatenate([top, xb[:TH - 1]], axis=0)      # row h-1 for every row h
    acc = acc + row_taps(x_up, 0)

    bot = bot_ref[0, 0] * jnp.where(t < nt - 1, 1.0, 0.0)   # zero pad at bottom edge
    x_dn = jnp.concatenate([xb[1:], bot], axis=0)           # row h+1 for every row h
    acc = acc + row_taps(x_dn, 2)

    # Folded BN1 + ReLU.
    y = jnp.maximum(acc + b1, 0.0)

    # 1x1 conv as a lane-dense block-diagonal matmul on the MXU (f32 accumulate).
    y2 = jnp.dot(y, pw_ref[...], preferred_element_type=jnp.float32)

    # Folded BN2 + ReLU, residual add, lane-dense store.
    o_ref[0] = (jnp.maximum(y2 + b2, 0.0) + xb).astype(o_ref.dtype)


def _pick_tile_h(H, WC, budget_bytes=8 * 1024 * 1024, max_rows=16):
    """Row-tile height: largest multiple-of-8 divisor of H (capped at `max_rows` since
    the kernel holds a handful of full-tile f32 values in vregs) whose double-buffered
    input+output blocks fit `budget_bytes`, preferring >= 2 row tiles per image so the
    auto-pipeline overlaps DMA with compute and megacore has a second parallel axis.
    TODO(synk): 8-row sub-block loop inside the kernel to lift the max_rows cap."""
    cands = [th for th in range(8, min(H, max_rows) + 1, 8) if H % th == 0]
    if not cands:
        return H                                      # tiny / odd H: one tile per image
    fits = [th for th in cands if 4 * th * WC * 4 <= budget_bytes] or [cands[0]]
    th = fits[-1]
    if th == H and len(fits) > 1:
        th = fits[-2]                                 # keep >= 2 row tiles per image
    return th


def conv_block_pallas(x_nchw, params):
    """x_nchw: (N, C, H, W) float32. Returns (N, C, H, W) float32. Eval-mode BN."""
    eps = 1e-6
    dw_w = params["dw_w"]      # (C, 1, 3, 3)
    dw_b = params["dw_b"]      # (C,)
    g1, bt1, rm1, rv1 = params["g1"], params["bt1"], params["rm1"], params["rv1"]
    pw_w = params["pw_w"]      # (C, C, 1, 1)
    pw_b = params["pw_b"]      # (C,)
    g2, bt2, rm2, rv2 = params["g2"], params["bt2"], params["rm2"], params["rv2"]

    N, C, H, W = x_nchw.shape
    WC = W * C

    # NCHW -> NHWC -> lane-packed (N, H, W*C): the last dim is a multiple of 128 for the
    # demo shapes, so blocks / stores are lane-dense.
    # TODO(synk): keep activations in this layout across layers to drop the transposes.
    x = jnp.transpose(x_nchw, (0, 2, 3, 1)).reshape(N, H, WC)
    x_rows = x.reshape(N, H, 1, WC)        # 1-row halo view (metadata-only reshape)

    # Fold BN1 (eval, running stats) into the depthwise conv; tile along W so lane
    # w*C + c carries the channel-c weight/bias.
    scale1 = g1 / jnp.sqrt(rv1 + eps)                               # (C,)
    dww = jnp.transpose(dw_w[:, 0, :, :], (1, 2, 0)) * scale1       # (3, 3, C)
    dww_wc = jnp.tile(dww, (1, 1, W))                               # (3, 3, W*C)
    bias1_wc = jnp.tile((dw_b - rm1) * scale1 + bt1, W).reshape(1, WC)

    # Fold BN2 (eval) into the pointwise conv; expand to a block-diagonal (WC, WC)
    # matrix so the 1x1 conv is a lane-dense matmul (no relayout around the dot).
    scale2 = g2 / jnp.sqrt(rv2 + eps)                               # (C,)
    pww = jnp.transpose(pw_w[:, :, 0, 0], (1, 0)) * scale2          # (Cin, Cout)
    pww_bd = jnp.kron(jnp.eye(W, dtype=pww.dtype), pww)             # (W*C, W*C)
    bias2_wc = jnp.tile((pw_b - rm2) * scale2 + bt2, W).reshape(1, WC)

    TH = _pick_tile_h(H, WC)
    nT = H // TH

    body_spec = pl.BlockSpec((1, TH, WC), lambda n, t: (n, t, 0))
    # 1-row halo blocks (block size 1 along H -> block index == row index), clamped at
    # the image edges; the kernel masks them to zero padding there.
    top_spec = pl.BlockSpec((1, 1, 1, WC),
                            lambda n, t: (n, jnp.maximum(t * TH - 1, 0), 0, 0))
    bot_spec = pl.BlockSpec((1, 1, 1, WC),
                            lambda n, t: (n, jnp.minimum(t * TH + TH, H - 1), 0, 0))

    out = pl.pallas_call(
        partial(_conv_block_kernel, C=C),
        out_shape=jax.ShapeDtypeStruct((N, H, WC), x.dtype),
        grid_spec=pltpu.PrefetchScalarGridSpec(
            num_scalar_prefetch=0,
            grid=(N, nT),
            in_specs=[
                body_spec,
                top_spec,
                bot_spec,
                pl.BlockSpec((3, 3, WC), lambda n, t: (0, 0, 0)),
                pl.BlockSpec((1, WC), lambda n, t: (0, 0)),
                pl.BlockSpec((WC, WC), lambda n, t: (0, 0)),
                pl.BlockSpec((1, WC), lambda n, t: (0, 0)),
            ],
            out_specs=pl.BlockSpec((1, TH, WC), lambda n, t: (n, t, 0)),
        ),
        compiler_params=pltpu.CompilerParams(
            dimension_semantics=("parallel", "parallel"),
            # <= ~48 MiB keeps headroom on v7x's 64 MiB VMEM; fine for v5e/v6e too.
            vmem_limit_bytes=48 * 1024 * 1024,
        ),
    )(x, x_rows, x_rows, dww_wc, bias1_wc, pww_bd, bias2_wc)

    # lane-packed -> NHWC -> NCHW
    return jnp.transpose(out.reshape(N, H, W, C), (0, 3, 1, 2))


def conv_block_ref(x_nchw, params):
    """Pure-JAX reference (eval-mode BN), NCHW, mirrors the PyTorch module."""
    eps = 1e-6
    N, C, H, W = x_nchw.shape
    dn = lax.conv_dimension_numbers(x_nchw.shape, params["dw_w"].shape,
                                    ("NCHW", "OIHW", "NCHW"))

    def bn(y, g, b, rm, rv):
        return ((y - rm[None, :, None, None]) / jnp.sqrt(rv + eps)[None, :, None, None]
                * g[None, :, None, None] + b[None, :, None, None])

    y = lax.conv_general_dilated(x_nchw, params["dw_w"], (1, 1), "SAME",
                                 feature_group_count=C, dimension_numbers=dn)
    y = y + params["dw_b"][None, :, None, None]
    y = jnp.maximum(bn(y, params["g1"], params["bt1"], params["rm1"], params["rv1"]), 0.0)

    y = lax.conv_general_dilated(y, params["pw_w"], (1, 1), "SAME",
                                 dimension_numbers=dn)
    y = y + params["pw_b"][None, :, None, None]
    y = jnp.maximum(bn(y, params["g2"], params["bt2"], params["rm2"], params["rv2"]), 0.0)
    return y + x_nchw


def make_params(key, dim):
    ks = jax.random.split(key, 10)
    return {
        "dw_w": 0.1 * jax.random.normal(ks[0], (dim, 1, 3, 3), jnp.float32),
        "dw_b": 0.1 * jax.random.normal(ks[1], (dim,), jnp.float32),
        "g1":   1.0 + 0.1 * jax.random.normal(ks[2], (dim,), jnp.float32),
        "bt1":  0.1 * jax.random.normal(ks[3], (dim,), jnp.float32),
        "rm1":  0.1 * jax.random.normal(ks[4], (dim,), jnp.float32),
        "rv1":  jax.random.uniform(ks[5], (dim,), jnp.float32, 0.5, 1.5),
        "pw_w": 0.1 * jax.random.normal(ks[6], (dim, dim, 1, 1), jnp.float32),
        "pw_b": 0.1 * jax.random.normal(ks[7], (dim,), jnp.float32),
        "g2":   1.0 + 0.1 * jax.random.normal(ks[8], (dim,), jnp.float32),
        "bt2":  0.1 * jax.random.normal(ks[9], (dim,), jnp.float32),
        "rm2":  0.05 * jnp.ones((dim,), jnp.float32),
        "rv2":  0.9 * jnp.ones((dim,), jnp.float32),
    }


if __name__ == "__main__":
    key = jax.random.PRNGKey(0)
    k_x, k_p = jax.random.split(key)

    # W*C = 512 (lane-dense), TH = 8 -> grid (2, 2): halo path exercised.
    N, C, H, W = 2, 32, 16, 16
    x = jax.random.normal(k_x, (N, C, H, W), jnp.float32)
    params = make_params(k_p, C)

    out = jax.block_until_ready(conv_block_pallas(x, params))
    ref = jax.block_until_ready(conv_block_ref(x, params))

    assert out.shape == (N, C, H, W)
    err = float(jnp.max(jnp.abs(out - ref)))
    assert jnp.allclose(out, ref, atol=1e-4, rtol=1e-4), err
    print("KERNEL_OK")
</pallas_src>

<mosaic_0001>
module attributes {stable_mosaic.version = 11 : i64} {
  func.func @_conv_block_kernel(%arg0: i32, %arg1: i32, %arg2: memref<1x8x512xf32, #tpu.memory_space<vmem>>, %arg3: memref<1x1x1x512xf32, #tpu.memory_space<vmem>>, %arg4: memref<1x1x1x512xf32, #tpu.memory_space<vmem>>, %arg5: memref<3x3x512xf32, #tpu.memory_space<vmem>>, %arg6: memref<1x512xf32, #tpu.memory_space<vmem>>, %arg7: memref<512x512xf32, #tpu.memory_space<vmem>>, %arg8: memref<1x512xf32, #tpu.memory_space<vmem>>, %arg9: memref<1x8x512xf32, #tpu.memory_space<vmem>>) attributes {dimension_semantics = [#tpu.dimension_semantics<parallel>, #tpu.dimension_semantics<parallel>], iteration_bounds = array<i64: 2, 2>, scalar_prefetch = 0 : i64, scratch_operands = 0 : i64, tpu.core_type = #tpu.core_type<tc>, window_params = [{transform_indices = @transform_0, window_bounds = array<i64: 1, 8, 512>}, {transform_indices = @transform_1, window_bounds = array<i64: 1, 1, 1, 512>}, {transform_indices = @transform_2, window_bounds = array<i64: 1, 1, 1, 512>}, {pipeline_mode = #tpu.pipeline_mode<synchronous>, transform_indices = @transform_3, window_bounds = array<i64: 3, 3, 512>}, {pipeline_mode = #tpu.pipeline_mode<synchronous>, transform_indices = @transform_4, window_bounds = array<i64: 1, 512>}, {pipeline_mode = #tpu.pipeline_mode<synchronous>, transform_indices = @transform_5, window_bounds = array<i64: 512, 512>}, {pipeline_mode = #tpu.pipeline_mode<synchronous>, transform_indices = @transform_6, window_bounds = array<i64: 1, 512>}, {transform_indices = @transform_7, window_bounds = array<i64: 1, 8, 512>}]} {
    %c0 = arith.constant 0 : index
    %c0_0 = arith.constant 0 : index
    %c0_1 = arith.constant 0 : index
    %0 = vector.load %arg2[%c0, %c0_0, %c0_1] : memref<1x8x512xf32, #tpu.memory_space<vmem>>, vector<1x8x512xf32>
    %1 = vector.shape_cast %0 : vector<1x8x512xf32> to vector<8x512xf32>
    %c0_2 = arith.constant 0 : index
    %c0_3 = arith.constant 0 : index
    %c0_4 = arith.constant 0 : index
    %2 = vector.load %arg5[%c0_2, %c0_3, %c0_4] : memref<3x3x512xf32, #tpu.memory_space<vmem>>, vector<3x3x512xf32>
    %c0_5 = arith.constant 0 : index
    %c0_6 = arith.constant 0 : index
    %3 = vector.load %arg6[%c0_5, %c0_6] : memref<1x512xf32, #tpu.memory_space<vmem>>, vector<1x512xf32>
    %4 = vector.shape_cast %3 : vector<1x512xf32> to vector<512xf32>
    %c0_7 = arith.constant 0 : index
    %c0_8 = arith.constant 0 : index
    %5 = vector.load %arg8[%c0_7, %c0_8] : memref<1x512xf32, #tpu.memory_space<vmem>>, vector<1x512xf32>
    %6 = vector.shape_cast %5 : vector<1x512xf32> to vector<512xf32>
    %cst = arith.constant 0.000000e+00 : f32
    %7 = vector.broadcast %cst : f32 to vector<8x32xf32>
    %8 = vector.extract_strided_slice %1 {offsets = [0, 0], sizes = [8, 480], strides = [1, 1]} : vector<8x512xf32> to vector<8x480xf32>
    %9 = tpu.concatenate %7, %8 in 1 : vector<8x32xf32>, vector<8x480xf32> -> vector<8x512xf32>
    %10 = vector.extract_strided_slice %1 {offsets = [0, 32], sizes = [8, 480], strides = [1, 1]} : vector<8x512xf32> to vector<8x480xf32>
    %11 = tpu.concatenate %10, %7 in 1 : vector<8x480xf32>, vector<8x32xf32> -> vector<8x512xf32>
    %12 = vector.extract_strided_slice %2 {offsets = [1, 0, 0], sizes = [1, 1, 512], strides = [1, 1, 1]} : vector<3x3x512xf32> to vector<1x1x512xf32>
    %13 = vector.shape_cast %12 : vector<1x1x512xf32> to vector<512xf32>
    %14 = vector.shape_cast %13 : vector<512xf32> to vector<1x512xf32>
    %15 = vector.broadcast %14 : vector<1x512xf32> to vector<8x512xf32>
    %16 = arith.mulf %9, %15 : vector<8x512xf32>
    %17 = vector.extract_strided_slice %2 {offsets = [1, 1, 0], sizes = [1, 1, 512], strides = [1, 1, 1]} : vector<3x3x512xf32> to vector<1x1x512xf32>
    %18 = vector.shape_cast %17 : vector<1x1x512xf32> to vector<512xf32>
    %19 = vector.shape_cast %18 : vector<512xf32> to vector<1x512xf32>
    %20 = vector.broadcast %19 : vector<1x512xf32> to vector<8x512xf32>
    %21 = arith.mulf %1, %20 : vector<8x512xf32>
    %22 = arith.addf %16, %21 : vector<8x512xf32>
    %23 = vector.extract_strided_slice %2 {offsets = [1, 2, 0], sizes = [1, 1, 512], strides = [1, 1, 1]} : vector<3x3x512xf32> to vector<1x1x512xf32>
    %24 = vector.shape_cast %23 : vector<1x1x512xf32> to vector<512xf32>
    %25 = vector.shape_cast %24 : vector<512xf32> to vector<1x512xf32>
    %26 = vector.broadcast %25 : vector<1x512xf32> to vector<8x512xf32>
    %27 = arith.mulf %11, %26 : vector<8x512xf32>
    %28 = arith.addf %22, %27 : vector<8x512xf32>
    %c0_9 = arith.constant 0 : index
    %c0_10 = arith.constant 0 : index
    %c0_11 = arith.constant 0 : index
    %c0_12 = arith.constant 0 : index
    %29 = vector.load %arg3[%c0_9, %c0_10, %c0_11, %c0_12] : memref<1x1x1x512xf32, #tpu.memory_space<vmem>>, vector<1x1x1x512xf32>
    %30 = vector.shape_cast %29 : vector<1x1x1x512xf32> to vector<1x512xf32>
    %c0_i32 = arith.constant 0 : i32
    %31 = arith.cmpi sgt, %arg1, %c0_i32 : i32
    %cst_13 = arith.constant 1.000000e+00 : f32
    %cst_14 = arith.constant 0.000000e+00 : f32
    %32 = arith.select %31, %cst_13, %cst_14 : f32
    %33 = vector.broadcast %32 : f32 to vector<1x512xf32>
    %34 = arith.mulf %30, %33 : vector<1x512xf32>
    %35 = vector.extract_strided_slice %1 {offsets = [0, 0], sizes = [7, 512], strides = [1, 1]} : vector<8x512xf32> to vector<7x512xf32>
    %36 = tpu.concatenate %34, %35 in 0 : vector<1x512xf32>, vector<7x512xf32> -> vector<8x512xf32>
    %37 = vector.extract_strided_slice %36 {offsets = [0, 0], sizes = [8, 480], strides = [1, 1]} : vector<8x512xf32> to vector<8x480xf32>
    %38 = tpu.concatenate %7, %37 in 1 : vector<8x32xf32>, vector<8x480xf32> -> vector<8x512xf32>
    %39 = vector.extract_strided_slice %36 {offsets = [0, 32], sizes = [8, 480], strides = [1, 1]} : vector<8x512xf32> to vector<8x480xf32>
    %40 = tpu.concatenate %39, %7 in 1 : vector<8x480xf32>, vector<8x32xf32> -> vector<8x512xf32>
    %41 = vector.extract_strided_slice %2 {offsets = [0, 0, 0], sizes = [1, 1, 512], strides = [1, 1, 1]} : vector<3x3x512xf32> to vector<1x1x512xf32>
    %42 = vector.shape_cast %41 : vector<1x1x512xf32> to vector<512xf32>
    %43 = vector.shape_cast %42 : vector<512xf32> to vector<1x512xf32>
    %44 = vector.broadcast %43 : vector<1x512xf32> to vector<8x512xf32>
    %45 = arith.mulf %38, %44 : vector<8x512xf32>
    %46 = vector.extract_strided_slice %2 {offsets = [0, 1, 0], sizes = [1, 1, 512], strides = [1, 1, 1]} : vector<3x3x512xf32> to vector<1x1x512xf32>
    %47 = vector.shape_cast %46 : vector<1x1x512xf32> to vector<512xf32>
    %48 = vector.shape_cast %47 : vector<512xf32> to vector<1x512xf32>
    %49 = vector.broadcast %48 : vector<1x512xf32> to vector<8x512xf32>
    %50 = arith.mulf %36, %49 : vector<8x512xf32>
    %51 = arith.addf %45, %50 : vector<8x512xf32>
    %52 = vector.extract_strided_slice %2 {offsets = [0, 2, 0], sizes = [1, 1, 512], strides = [1, 1, 1]} : vector<3x3x512xf32> to vector<1x1x512xf32>
    %53 = vector.shape_cast %52 : vector<1x1x512xf32> to vector<512xf32>
    %54 = vector.shape_cast %53 : vector<512xf32> to vector<1x512xf32>
    %55 = vector.broadcast %54 : vector<1x512xf32> to vector<8x512xf32>
    %56 = arith.mulf %40, %55 : vector<8x512xf32>
    %57 = arith.addf %51, %56 : vector<8x512xf32>
    %58 = arith.addf %28, %57 : vector<8x512xf32>
    %c0_15 = arith.constant 0 : index
    %c0_16 = arith.constant 0 : index
    %c0_17 = arith.constant 0 : index
    %c0_18 = arith.constant 0 : index
    %59 = vector.load %arg4[%c0_15, %c0_16, %c0_17, %c0_18] : memref<1x1x1x512xf32, #tpu.memory_space<vmem>>, vector<1x1x1x512xf32>
    %60 = vector.shape_cast %59 : vector<1x1x1x512xf32> to vector<1x512xf32>
    %c1_i32 = arith.constant 1 : i32
    %61 = arith.cmpi slt, %arg1, %c1_i32 : i32
    %cst_19 = arith.constant 1.000000e+00 : f32
    %cst_20 = arith.constant 0.000000e+00 : f32
    %62 = arith.select %61, %cst_19, %cst_20 : f32
    %63 = vector.broadcast %62 : f32 to vector<1x512xf32>
    %64 = arith.mulf %60, %63 : vector<1x512xf32>
    %65 = vector.extract_strided_slice %1 {offsets = [1, 0], sizes = [7, 512], strides = [1, 1]} : vector<8x512xf32> to vector<7x512xf32>
    %66 = tpu.concatenate %65, %64 in 0 : vector<7x512xf32>, vector<1x512xf32> -> vector<8x512xf32>
    %67 = vector.extract_strided_slice %66 {offsets = [0, 0], sizes = [8, 480], strides = [1, 1]} : vector<8x512xf32> to vector<8x480xf32>
    %68 = tpu.concatenate %7, %67 in 1 : vector<8x32xf32>, vector<8x480xf32> -> vector<8x512xf32>
    %69 = vector.extract_strided_slice %66 {offsets = [0, 32], sizes = [8, 480], strides = [1, 1]} : vector<8x512xf32> to vector<8x480xf32>
    %70 = tpu.concatenate %69, %7 in 1 : vector<8x480xf32>, vector<8x32xf32> -> vector<8x512xf32>
    %71 = vector.extract_strided_slice %2 {offsets = [2, 0, 0], sizes = [1, 1, 512], strides = [1, 1, 1]} : vector<3x3x512xf32> to vector<1x1x512xf32>
    %72 = vector.shape_cast %71 : vector<1x1x512xf32> to vector<512xf32>
    %73 = vector.shape_cast %72 : vector<512xf32> to vector<1x512xf32>
    %74 = vector.broadcast %73 : vector<1x512xf32> to vector<8x512xf32>
    %75 = arith.mulf %68, %74 : vector<8x512xf32>
    %76 = vector.extract_strided_slice %2 {offsets = [2, 1, 0], sizes = [1, 1, 512], strides = [1, 1, 1]} : vector<3x3x512xf32> to vector<1x1x512xf32>
    %77 = vector.shape_cast %76 : vector<1x1x512xf32> to vector<512xf32>
    %78 = vector.shape_cast %77 : vector<512xf32> to vector<1x512xf32>
    %79 = vector.broadcast %78 : vector<1x512xf32> to vector<8x512xf32>
    %80 = arith.mulf %66, %79 : vector<8x512xf32>
    %81 = arith.addf %75, %80 : vector<8x512xf32>
    %82 = vector.extract_strided_slice %2 {offsets = [2, 2, 0], sizes = [1, 1, 512], strides = [1, 1, 1]} : vector<3x3x512xf32> to vector<1x1x512xf32>
    %83 = vector.shape_cast %82 : vector<1x1x512xf32> to vector<512xf32>
    %84 = vector.shape_cast %83 : vector<512xf32> to vector<1x512xf32>
    %85 = vector.broadcast %84 : vector<1x512xf32> to vector<8x512xf32>
    %86 = arith.mulf %70, %85 : vector<8x512xf32>
    %87 = arith.addf %81, %86 : vector<8x512xf32>
    %88 = arith.addf %58, %87 : vector<8x512xf32>
    %89 = vector.shape_cast %4 : vector<512xf32> to vector<1x512xf32>
    %90 = vector.broadcast %89 : vector<1x512xf32> to vector<8x512xf32>
    %91 = arith.addf %88, %90 : vector<8x512xf32>
    %cst_21 = arith.constant 0.000000e+00 : f32
    %92 = vector.broadcast %cst_21 : f32 to vector<8x512xf32>
    %93 = arith.maximumf %91, %92 : vector<8x512xf32>
    %c0_22 = arith.constant 0 : index
    %c0_23 = arith.constant 0 : index
    %94 = vector.load %arg7[%c0_22, %c0_23] : memref<512x512xf32, #tpu.memory_space<vmem>>, vector<512x512xf32>
    %cst_24 = arith.constant dense<0.000000e+00> : vector<8x512xf32>
    %95 = tpu.matmul %93, %94, %cst_24 {dimension_numbers = #tpu.dot_dimension_numbers<[1], [0], [0], [1], [0, 0, 1, 1], [], []>} : vector<8x512xf32>, vector<512x512xf32>, vector<8x512xf32> -> vector<8x512xf32>
    %96 = vector.shape_cast %6 : vector<512xf32> to vector<1x512xf32>
    %97 = vector.broadcast %96 : vector<1x512xf32> to vector<8x512xf32>
    %98 = arith.addf %95, %97 : vector<8x512xf32>
    %cst_25 = arith.constant 0.000000e+00 : f32
    %99 = vector.broadcast %cst_25 : f32 to vector<8x512xf32>
    %100 = arith.maximumf %98, %99 : vector<8x512xf32>
    %101 = arith.addf %100, %1 : vector<8x512xf32>
    %c0_26 = arith.constant 0 : index
    %c0_27 = arith.constant 0 : index
    %c0_28 = arith.constant 0 : index
    %102 = vector.load %arg9[%c0_26, %c0_27, %c0_28] : memref<1x8x512xf32, #tpu.memory_space<vmem>>, vector<1x8x512xf32>
    %103 = vector.shape_cast %102 : vector<1x8x512xf32> to vector<8x512xf32>
    %104 = vector.shape_cast %101 : vector<8x512xf32> to vector<1x8x512xf32>
    tpu.vector_store %arg9[%c0_26, %c0_27, %c0_28], %104 {strides = array<i32>} : memref<1x8x512xf32, #tpu.memory_space<vmem>>, vector<1x8x512xf32>,
    return
  }
  func.func @transform_0(%arg0: i32, %arg1: i32) -> (i32, i32, i32) {
    %c0_i32 = arith.constant 0 : i32
    %c0_i32_0 = arith.constant 0 : i32
    return %arg0, %arg1, %c0_i32 : i32, i32, i32
  }
  func.func @transform_1(%arg0: i32, %arg1: i32) -> (i32, i32, i32, i32) {
    %c8_i32 = arith.constant 8 : i32
    %0 = arith.muli %arg1, %c8_i32 : i32
    %c1_i32 = arith.constant 1 : i32
    %1 = arith.subi %0, %c1_i32 : i32
    %c0_i32 = arith.constant 0 : i32
    %2 = arith.maxsi %1, %c0_i32 : i32
    %c0_i32_0 = arith.constant 0 : i32
    %c0_i32_1 = arith.constant 0 : i32
    %c0_i32_2 = arith.constant 0 : i32
    return %arg0, %2, %c0_i32_0, %c0_i32_1 : i32, i32, i32, i32
  }
  func.func @transform_2(%arg0: i32, %arg1: i32) -> (i32, i32, i32, i32) {
    %c8_i32 = arith.constant 8 : i32
    %0 = arith.muli %arg1, %c8_i32 : i32
    %c8_i32_0 = arith.constant 8 : i32
    %1 = arith.addi %0, %c8_i32_0 : i32
    %c15_i32 = arith.constant 15 : i32
    %2 = arith.minsi %1, %c15_i32 : i32
    %c0_i32 = arith.constant 0 : i32
    %c0_i32_1 = arith.constant 0 : i32
    %c0_i32_2 = arith.constant 0 : i32
    return %arg0, %2, %c0_i32, %c0_i32_1 : i32, i32, i32, i32
  }
  func.func @transform_3(%arg0: i32, %arg1: i32) -> (i32, i32, i32) {
    %c0_i32 = arith.constant 0 : i32
    %c0_i32_0 = arith.constant 0 : i32
    %c0_i32_1 = arith.constant 0 : i32
    %c0_i32_2 = arith.constant 0 : i32
    return %c0_i32, %c0_i32_0, %c0_i32_1 : i32, i32, i32
  }
  func.func @transform_4(%arg0: i32, %arg1: i32) -> (i32, i32) {
    %c0_i32 = arith.constant 0 : i32
    %c0_i32_0 = arith.constant 0 : i32
    %c0_i32_1 = arith.constant 0 : i32
    return %c0_i32, %c0_i32_0 : i32, i32
  }
  func.func @transform_5(%arg0: i32, %arg1: i32) -> (i32, i32) {
    %c0_i32 = arith.constant 0 : i32
    %c0_i32_0 = arith.constant 0 : i32
    %c0_i32_1 = arith.constant 0 : i32
    return %c0_i32, %c0_i32_0 : i32, i32
  }
  func.func @transform_6(%arg0: i32, %arg1: i32) -> (i32, i32) {
    %c0_i32 = arith.constant 0 : i32
    %c0_i32_0 = arith.constant 0 : i32
    %c0_i32_1 = arith.constant 0 : i32
    return %c0_i32, %c0_i32_0 : i32, i32
  }
  func.func @transform_7(%arg0: i32, %arg1: i32) -> (i32, i32, i32) {
    %c0_i32 = arith.constant 0 : i32
    %c0_i32_0 = arith.constant 0 : i32
    return %arg0, %arg1, %c0_i32 : i32, i32, i32
  }
}

</mosaic_0001>

<llo_original>
// kernel: tpu_custom_call.1
$region0: #{tpu_custom_call.1}
  #allocation0 [shape = 'u32[]', space=smem, size = 0x4, offset = 0x4, fixed_abs, tag = 'smem constant byte address 0x4 - core index']
  #allocation1 [shape = 'u32[144,128]{1,0:T(1,128)}', space=vmem, size = 0x12000, scoped, tag = 'internal scratch']
  %s0 = inlined_call_operand.hbm [shape: f32[2,16,512], index: 0, kind: input, shape index: {}]
  %s1 = inlined_call_operand.hbm [shape: f32[2,16,1,512], index: 1, kind: input, shape index: {}]
  %s2 = inlined_call_operand.hbm [shape: f32[2,16,1,512], index: 2, kind: input, shape index: {}]
  %s3 = inlined_call_operand.hbm [shape: f32[3,3,512], index: 3, kind: input, shape index: {}]
  %s4 = inlined_call_operand.vmem [shape: f32[1,512], index: 4, kind: input, shape index: {}]
  %s5 = inlined_call_operand.hbm [shape: f32[512,512], index: 5, kind: input, shape index: {}]
  %s6 = inlined_call_operand.vmem [shape: f32[1,512], index: 6, kind: input, shape index: {}]
  %s7 = inlined_call_operand.hbm [shape: f32[2,16,512], index: 7, kind: output, shape index: {}]
  %s8 = sld [smem:[#allocation0]]
  $region81: #{tpu_custom_call.1} parent=0
    _
  %s10 = ssub.s32 1, %s8
  %s11 = scalar_select 0, %s10, %s8
  $region1: #{tpu_custom_call.1} parent=0
    #allocation2 [shape = 'u8[32768]{0}', space=vmem, size = 0x8000, scoped, tag = 'input window, operand 0']
    #allocation3 [shape = 's32[2]{0}', space=sflag, size = 0x8, scoped, tag = 'scoped memory for tpu_custom_call.1']
    #allocation4 [shape = 's32[2]{0}', space=sflag, size = 0x8, scoped, tag = 'scoped memory for tpu_custom_call.1']
    #allocation5 [shape = 'u8[4096]{0}', space=vmem, size = 0x1000, scoped, tag = 'input window, operand 1']
    #allocation6 [shape = 's32[2]{0}', space=sflag, size = 0x8, scoped, tag = 'scoped memory for tpu_custom_call.1']
    #allocation7 [shape = 'u8[4096]{0}', space=vmem, size = 0x1000, scoped, tag = 'input window, operand 2']
    #allocation8 [shape = 'u8[24576]{0}', space=vmem, size = 0x6000, scoped, tag = 'input window, operand 3, single buffered']
    #allocation9 [shape = 's32[1]{0}', space=sflag, size = 0x4, scoped, tag = 'scoped memory for tpu_custom_call.1']
    #allocation10 [shape = 'u8[1048576]{0}', space=vmem, size = 0x100000, scoped, tag = 'input window, operand 5, single buffered']
    #allocation11 [shape = 'u8[32768]{0}', space=vmem, size = 0x8000, scoped, tag = 'output window, operand 0']
    %12 = vsyncpa [#allocation3], 0
    %s13 = scalar_lea.sflag [#allocation3], 1
    %14 = vsyncpa %s13, 0
    %15 = vsyncpa [#allocation6], 0
    %s16 = scalar_lea.sflag [#allocation6], 1
    %17 = vsyncpa %s16, 0
    %18 = vsyncpa [#allocation9], 0
    %19 = vsyncpa [#allocation4], 0
    %s20 = scalar_lea.sflag [#allocation4], 1
    %21 = vsyncpa %s20, 0
    loop: start=0, step=1, limit=6
    $region2: #{tpu_custom_call.1} parent=1 // loop_pre_header
      _
    $region3: #{tpu_custom_call.1} parent=1 // loop_header
      %s23 = sphi 0, %s27
      %p24 = scmp.ge.s32.totalorder %s23, 6
      %s30 = sphi 0, %s42
      %s31 = sphi 0, %s38
      %s32 = sphi 0, %s30
      %s33 = sphi 0, %s31
      %s34 = sphi 0, %s32
      %s35 = sphi 0, %s33
      %s47 = sphi 0, %s49
      %s50 = sphi 0, %s47
      %s51 = sphi 0, %s50
      %s67 = sphi 0, %s51
      %s83 = sphi 0, %s85
      %s86 = sphi 0, %s83
      %s87 = sphi 0, %s86
      %s103 = sphi 0, %s87
      %s119 = sphi 0, %s121
      %s122 = sphi 0, %s119
      %s123 = sphi 0, %s122
      %s139 = sphi 0, %s123
      %s143 = sphi 0, %s143
      %s145 = sphi 0, %s143
      %s146 = sphi 0, %s145
      %s160 = sphi 0, %s146
      %s164 = sphi 0, %s164
      %s166 = sphi 0, %s164
      %s167 = sphi 0, %s166
      %s181 = sphi 0, %s167
      %s185 = sphi 0, %s185
      %s187 = sphi 0, %s185
      %s188 = sphi 0, %s187
      %s202 = sphi 0, %s188
      %s206 = sphi 0, %s206
      %s208 = sphi 0, %s206
      %s209 = sphi 0, %s208
      %s223 = sphi 0, %s209
      %s231 = sphi 0, %s233
      %s234 = sphi 0, %s231
      %s235 = sphi 0, %s234
      %s251 = sphi 0, %s235
    $region4: #{tpu_custom_call.1} parent=1 // loop_header_branch
      %26 = sbr.rel (%p24) target = $region8
    $region5: #{tpu_custom_call.1} parent=1 // loop_body
      %s28 = ssub.s32 %s23, 1
      %s29 = ssub.s32 %s23, 2
      %s36 = sadd.s32 1, %s31
      %p37 = scmp.ge.s32.totalorder %s36, 2
      %s38 = scalar_select %p37, 0, %s36
      %s39 = sadd.s32 1, %s30
      %s40 = scalar_select %p37, %s39, %s30
      %p41 = scmp.ge.s32.totalorder %s40, 2
      %s42 = scalar_select %p41, 0, %s40
      %s43 = ssub.s32 %s30, %s42
      %s44 = ssub.s32 %s31, %s38
      %s45 = sor.u32 %s43, %s44
      %p46 = scmp.eq.s32.totalorder %s45, 0
      %s48 = sadd.s32 %s47, 1
      %s49 = scalar_select %p46, %s47, %s48
      %p52 = pneg %p46
      %p53 = scmp.eq.s32.totalorder %s23, 3
      %p54 = por %p52, %p53
      %p55 = scmp.ne.s32.totalorder %s47, %s50
      %p56 = scmp.eq.s32.totalorder %s23, 0
      %p57 = por %p55, %p56
      %p58 = scmp.ne.s32.totalorder %s47, %s50
      %p59 = scmp.eq.s32.totalorder %s28, 3
      %p60 = por %p58, %p59
      %p61 = scmp.ne.s32.totalorder %s50, %s51
      %p62 = scmp.eq.s32.totalorder %s28, 0
      %p63 = por %p61, %p62
      %p64 = scmp.ne.s32.totalorder %s50, %s51
      %p65 = scmp.eq.s32.totalorder %s29, 3
      %p66 = por %p64, %p65
      %p68 = scmp.ne.s32.totalorder %s51, %s67
      %p69 = scmp.eq.s32.totalorder %s29, 0
      %p70 = por %p68, %p69
      %s71 = smul.u32 %s31, 8
      %s72 = ssub.s32 %s71, 1
      %p73 = scmp.gt.s32.totalorder %s72, 0
      %s74 = scalar_select %p73, %s72, 0
      %s75 = smul.u32 %s38, 8
      %s76 = ssub.s32 %s75, 1
      %p77 = scmp.gt.s32.totalorder %s76, 0
      %s78 = scalar_select %p77, %s76, 0
      %s79 = ssub.s32 %s30, %s42
      %s80 = ssub.s32 %s74, %s78
      %s81 = sor.u32 %s79, %s80
      %p82 = scmp.eq.s32.totalorder %s81, 0
      %s84 = sadd.s32 %s83, 1
      %s85 = scalar_select %p82, %s83, %s84
      %p88 = pneg %p82
      %p89 = scmp.eq.s32.totalorder %s23, 3
      %p90 = por %p88, %p89
      %p91 = scmp.ne.s32.totalorder %s83, %s86
      %p92 = scmp.eq.s32.totalorder %s23, 0
      %p93 = por %p91, %p92
      %p94 = scmp.ne.s32.totalorder %s83, %s86
      %p95 = scmp.eq.s32.totalorder %s28, 3
      %p96 = por %p94, %p95
      %p97 = scmp.ne.s32.totalorder %s86, %s87
      %p98 = scmp.eq.s32.totalorder %s28, 0
      %p99 = por %p97, %p98
      %p100 = scmp.ne.s32.totalorder %s86, %s87
      %p101 = scmp.eq.s32.totalorder %s29, 3
      %p102 = por %p100, %p101
      %p104 = scmp.ne.s32.totalorder %s87, %s103
      %p105 = scmp.eq.s32.totalorder %s29, 0
      %p106 = por %p104, %p105
      %s107 = smul.u32 %s31, 8
      %s108 = sadd.s32 %s107, 8
      %p109 = scmp.lt.s32.totalorder %s108, 15
      %s110 = scalar_select %p109, %s108, 15
      %s111 = smul.u32 %s38, 8
      %s112 = sadd.s32 %s111, 8
      %p113 = scmp.lt.s32.totalorder %s112, 15
      %s114 = scalar_select %p113, %s112, 15
      %s115 = ssub.s32 %s30, %s42
      %s116 = ssub.s32 %s110, %s114
      %s117 = sor.u32 %s115, %s116
      %p118 = scmp.eq.s32.totalorder %s117, 0
      %s120 = sadd.s32 %s119, 1
      %s121 = scalar_select %p118, %s119, %s120
      %p124 = pneg %p118
      %p125 = scmp.eq.s32.totalorder %s23, 3
      %p126 = por %p124, %p125
      %p127 = scmp.ne.s32.totalorder %s119, %s122
      %p128 = scmp.eq.s32.totalorder %s23, 0
      %p129 = por %p127, %p128
      %p130 = scmp.ne.s32.totalorder %s119, %s122
      %p131 = scmp.eq.s32.totalorder %s28, 3
      %p132 = por %p130, %p131
      %p133 = scmp.ne.s32.totalorder %s122, %s123
      %p134 = scmp.eq.s32.totalorder %s28, 0
      %p135 = por %p133, %p134
      %p136 = scmp.ne.s32.totalorder %s122, %s123
      %p137 = scmp.eq.s32.totalorder %s29, 3
      %p138 = por %p136, %p137
      %p140 = scmp.ne.s32.totalorder %s123, %s139
      %p141 = scmp.eq.s32.totalorder %s29, 0
      %p142 = por %p140, %p141
      %s144 = sadd.s32 %s143, 1
      %p147 = scmp.eq.s32.totalorder %s23, 3
      %p148 = scmp.ne.s32.totalorder %s143, %s145
      %p149 = scmp.eq.s32.totalorder %s23, 0
      %p150 = por %p148, %p149
      %p151 = scmp.ne.s32.totalorder %s143, %s145
      %p152 = scmp.eq.s32.totalorder %s28, 3
      %p153 = por %p151, %p152
      %p154 = scmp.ne.s32.totalorder %s145, %s146
      %p155 = scmp.eq.s32.totalorder %s28, 0
      %p156 = por %p154, %p155
      %p157 = scmp.ne.s32.totalorder %s145, %s146
      %p158 = scmp.eq.s32.totalorder %s29, 3
      %p159 = por %p157, %p158
      %p161 = scmp.ne.s32.totalorder %s146, %s160
      %p162 = scmp.eq.s32.totalorder %s29, 0
      %p163 = por %p161, %p162
      %s165 = sadd.s32 %s164, 1
      %p168 = scmp.eq.s32.totalorder %s23, 3
      %p169 = scmp.ne.s32.totalorder %s164, %s166
      %p170 = scmp.eq.s32.totalorder %s23, 0
      %p171 = por %p169, %p170
      %p172 = scmp.ne.s32.totalorder %s164, %s166
      %p173 = scmp.eq.s32.totalorder %s28, 3
      %p174 = por %p172, %p173
      %p175 = scmp.ne.s32.totalorder %s166, %s167
      %p176 = scmp.eq.s32.totalorder %s28, 0
      %p177 = por %p175, %p176
      %p178 = scmp.ne.s32.totalorder %s166, %s167
      %p179 = scmp.eq.s32.totalorder %s29, 3
      %p180 = por %p178, %p179
      %p182 = scmp.ne.s32.totalorder %s167, %s181
      %p183 = scmp.eq.s32.totalorder %s29, 0
      %p184 = por %p182, %p183
      %s186 = sadd.s32 %s185, 1
      %p189 = scmp.eq.s32.totalorder %s23, 3
      %p190 = scmp.ne.s32.totalorder %s185, %s187
      %p191 = scmp.eq.s32.totalorder %s23, 0
      %p192 = por %p190, %p191
      %p193 = scmp.ne.s32.totalorder %s185, %s187
      %p194 = scmp.eq.s32.totalorder %s28, 3
      %p195 = por %p193, %p194
      %p196 = scmp.ne.s32.totalorder %s187, %s188
      %p197 = scmp.eq.s32.totalorder %s28, 0
      %p198 = por %p196, %p197
      %p199 = scmp.ne.s32.totalorder %s187, %s188
      %p200 = scmp.eq.s32.totalorder %s29, 3
      %p201 = por %p199, %p200
      %p203 = scmp.ne.s32.totalorder %s188, %s202
      %p204 = scmp.eq.s32.totalorder %s29, 0
      %p205 = por %p203, %p204
      %s207 = sadd.s32 %s206, 1
      %p210 = scmp.eq.s32.totalorder %s23, 3
      %p211 = scmp.ne.s32.totalorder %s206, %s208
      %p212 = scmp.eq.s32.totalorder %s23, 0
      %p213 = por %p211, %p212
      %p214 = scmp.ne.s32.totalorder %s206, %s208
      %p215 = scmp.eq.s32.totalorder %s28, 3
      %p216 = por %p214, %p215
      %p217 = scmp.ne.s32.totalorder %s208, %s209
      %p218 = scmp.eq.s32.totalorder %s28, 0
      %p219 = por %p217, %p218
      %p220 = scmp.ne.s32.totalorder %s208, %s209
      %p221 = scmp.eq.s32.totalorder %s29, 3
      %p222 = por %p220, %p221
      %p224 = scmp.ne.s32.totalorder %s209, %s223
      %p225 = scmp.eq.s32.totalorder %s29, 0
      %p226 = por %p224, %p225
      %s227 = ssub.s32 %s30, %s42
      %s228 = ssub.s32 %s31, %s38
      %s229 = sor.u32 %s227, %s228
      %p230 = scmp.eq.s32.totalorder %s229, 0
      %s232 = sadd.s32 %s231, 1
      %s233 = scalar_select %p230, %s231, %s232
      %p236 = pneg %p230
      %p237 = scmp.eq.s32.totalorder %s23, 3
      %p238 = por %p236, %p237
      %p239 = scmp.ne.s32.totalorder %s231, %s234
      %p240 = scmp.eq.s32.totalorder %s23, 0
      %p241 = por %p239, %p240
      %p242 = scmp.ne.s32.totalorder %s231, %s234
      %p243 = scmp.eq.s32.totalorder %s28, 3
      %p244 = por %p242, %p243
      %p245 = scmp.ne.s32.totalorder %s234, %s235
      %p246 = scmp.eq.s32.totalorder %s28, 0
      %p247 = por %p245, %p246
      %p248 = scmp.ne.s32.totalorder %s234, %s235
      %p249 = scmp.eq.s32.totalorder %s29, 3
      %p250 = por %p248, %p249
      %p252 = scmp.ne.s32.totalorder %s235, %s251
      %p253 = scmp.eq.s32.totalorder %s29, 0
      %p254 = por %p252, %p253
      %p255 = scmp.le.s32.totalorder 1, %s23
      %p256 = scmp.lt.s32.totalorder %s23, 5
      %p257 = pnand %p255, %p256
      %p258 = pneg %p257
      // Predicated region
      $region9: #{tpu_custom_call.1} parent=5 // pred_check
        _
      $region10: #{tpu_custom_call.1} parent=5 // pred_check_branch
        %260 = sbr.rel (%p257) target = $region12
      $region11: #{tpu_custom_call.1} parent=5 // pred_region
        %s261 = ssub.s32 %s23, 1
        // Predicated region
        $region13: #{tpu_custom_call.1} parent=11 // pred_check
          %p262 = pneg %p156
        $region14: #{tpu_custom_call.1} parent=11 // pred_check_branch
          %264 = sbr.rel (%p262) target = $region16
        $region15: #{tpu_custom_call.1} parent=11 // pred_region
          %s266 = ssub.s32 768, 768
          %267 = vsyncadd [#allocation9], %s266
          %s268 = sshll.u32 [#allocation8], 4
          %s269 = int_to_ptr.vmem [resolvable:$true] %s268
          %274 = dma.hbm_to_vmem [thread:$0]  %s3, 768, %s269, [#allocation9], 256, 256, 16
        $region16: #{tpu_custom_call.1} parent=11 // pred_fallthru
          _
        // Predicated region
        $region17: #{tpu_custom_call.1} parent=11 // pred_check
          %p275 = pneg %p177
        $region18: #{tpu_custom_call.1} parent=11 // pred_check_branch
          %277 = sbr.rel (%p275) target = $region20
        $region19: #{tpu_custom_call.1} parent=11 // pred_region
          _
        $region20: #{tpu_custom_call.1} parent=11 // pred_fallthru
          _
        // Predicated region
        $region21: #{tpu_custom_call.1} parent=11 // pred_check
          %p278 = pneg %p198
        $region22: #{tpu_custom_call.1} parent=11 // pred_check_branch
          %280 = sbr.rel (%p278) target = $region24
        $region23: #{tpu_custom_call.1} parent=11 // pred_region
          %s282 = ssub.s32 32768, 32768
          %283 = vsyncadd [#allocation9], %s282
          %s284 = sshll.u32 [#allocation10], 4
          %s285 = int_to_ptr.vmem [resolvable:$true] %s284
          %290 = dma.hbm_to_vmem [thread:$0]  %s5, 32768, %s285, [#allocation9], 512, 512, 32
        $region24: #{tpu_custom_call.1} parent=11 // pred_fallthru
          _
        // Predicated region
        $region25: #{tpu_custom_call.1} parent=11 // pred_check
          %p291 = pneg %p219
        $region26: #{tpu_custom_call.1} parent=11 // pred_check_branch
          %293 = sbr.rel (%p291) target = $region28
        $region27: #{tpu_custom_call.1} parent=11 // pred_region
          _
        $region28: #{tpu_custom_call.1} parent=11 // pred_fallthru
          _
      $region12: #{tpu_custom_call.1} parent=5 // pred_fallthru
        _
      %p294 = scmp.lt.s32.totalorder %s23, 4
      // Predicated region
      $region29: #{tpu_custom_call.1} parent=5 // pred_check
        %p295 = pneg %p294
      $region30: #{tpu_custom_call.1} parent=5 // pred_check_branch
        %297 = sbr.rel (%p295) target = $region32
      $region31: #{tpu_custom_call.1} parent=5 // pred_region
        // Predicated region
        $region33: #{tpu_custom_call.1} parent=31 // pred_check
          %p298 = pneg %p57
        $region34: #{tpu_custom_call.1} parent=31 // pred_check_branch
          %300 = sbr.rel (%p298) target = $region36
        $region35: #{tpu_custom_call.1} parent=31 // pred_region
          %s301 = sand.u32 %s47, 1
          %s302 = scalar_lea.sflag [#allocation3], %s301
          %s303 = sand.u32 %s47, 1
          %s304 = smul.addr %s303, 32
          %s305 = scalar_lea.vmem [#allocation2], %s304
          %s307 = ssub.s32 512, 512
          %308 = vsyncadd %s302, %s307
          %s309 = smul.addr %s31, 4
          %s310 = smul.addr %s30, 8
          %s311 = sadd.s32 %s309, %s310
          %s312 = smul.addr %s311, 128
          %s313 = scalar_lea.hbm %s0, %s312
          %s315 = sshll.u32 %s305, 4
          %s316 = int_to_ptr.vmem [resolvable:$true] %s315
          %318 = dma.hbm_to_vmem [thread:$0]  %s313, 512, %s316, %s302
        $region36: #{tpu_custom_call.1} parent=31 // pred_fallthru
          _
        // Predicated region
        $region37: #{tpu_custom_call.1} parent=31 // pred_check
          %p319 = pneg %p93
        $region38: #{tpu_custom_call.1} parent=31 // pred_check_branch
          %321 = sbr.rel (%p319) target = $region40
        $region39: #{tpu_custom_call.1} parent=31 // pred_region
          %s322 = sand.u32 %s23, 1
          %s323 = scalar_lea.sflag [#allocation6], %s322
          %s324 = sand.u32 %s83, 1
          %s325 = smul.addr %s324, 4
          %s326 = scalar_lea.vmem [#allocation5], %s325
          %s327 = smul.u32 %s31, 8
          %s328 = ssub.s32 %s327, 1
          %p329 = scmp.gt.s32.totalorder %s328, 0
          %s330 = scalar_select %p329, %s328, 0
          %s332 = ssub.s32 64, 64
          %333 = vsyncadd %s323, %s332
          %s334 = smul.addr %s330, 4
          %s335 = smul.addr %s30, 64
          %s336 = sadd.s32 %s334, %s335
          %s337 = smul.addr %s336, 16
          %s338 = scalar_lea.hbm %s1, %s337
          %s340 = sshll.u32 %s326, 4
          %s341 = int_to_ptr.vmem [resolvable:$true] %s340
          %343 = dma.hbm_to_vmem [thread:$0]  %s338, 64, %s341, %s323
        $region40: #{tpu_custom_call.1} parent=31 // pred_fallthru
          _
        // Predicated region
        $region41: #{tpu_custom_call.1} parent=31 // pred_check
          %p344 = pneg %p129
        $region42: #{tpu_custom_call.1} parent=31 // pred_check_branch
          %346 = sbr.rel (%p344) target = $region44
        $region43: #{tpu_custom_call.1} parent=31 // pred_region
          %s347 = sand.u32 %s23, 1
          %s348 = scalar_lea.sflag [#allocation6], %s347
          %s349 = sand.u32 %s119, 1
          %s350 = smul.addr %s349, 4
          %s351 = scalar_lea.vmem [#allocation7], %s350
          %s352 = smul.u32 %s31, 8
          %s353 = sadd.s32 %s352, 8
          %p354 = scmp.lt.s32.totalorder %s353, 15
          %s355 = scalar_select %p354, %s353, 15
          %s357 = ssub.s32 64, 64
          %358 = vsyncadd %s348, %s357
          %s359 = smul.addr %s355, 4
          %s360 = smul.addr %s30, 64
          %s361 = sadd.s32 %s359, %s360
          %s362 = smul.addr %s361, 16
          %s363 = scalar_lea.hbm %s2, %s362
          %s365 = sshll.u32 %s351, 4
          %s366 = int_to_ptr.vmem [resolvable:$true] %s365
          %368 = dma.hbm_to_vmem [thread:$0]  %s363, 64, %s366, %s348
        $region44: #{tpu_custom_call.1} parent=31 // pred_fallthru
          _
      $region32: #{tpu_custom_call.1} parent=5 // pred_fallthru
        _
      %p369 = scmp.le.s32.totalorder 1, %s23
      %p370 = scmp.lt.s32.totalorder %s23, 5
      %p371 = pnand %p369, %p370
      %p372 = pneg %p371
      // Predicated region
      $region45: #{tpu_custom_call.1} parent=5 // pred_check
        _
      $region46: #{tpu_custom_call.1} parent=5 // pred_check_branch
        %374 = sbr.rel (%p371) target = $region48
      $region47: #{tpu_custom_call.1} parent=5 // pred_region
        %s375 = ssub.s32 %s23, 1
        %s376 = sand.u32 %s50, 1
        %s377 = scalar_lea.sflag [#allocation3], %s376
        %s378 = sand.u32 %s50, 1
        %s379 = smul.addr %s378, 32
        %s380 = scalar_lea.vmem [#allocation2], %s379
        // Predicated region
        $region49: #{tpu_custom_call.1} parent=47 // pred_check
          %p381 = pneg %p63
        $region50: #{tpu_custom_call.1} parent=47 // pred_check_branch
          %383 = sbr.rel (%p381) target = $region52
        $region51: #{tpu_custom_call.1} parent=47 // pred_region
          %384 = dma.done %s377, 512
        $region52: #{tpu_custom_call.1} parent=47 // pred_fallthru
          _
        %s385 = sand.u32 %s28, 1
        %s386 = scalar_lea.sflag [#allocation6], %s385
        %s387 = sand.u32 %s86, 1
        %s388 = smul.addr %s387, 4
        %s389 = scalar_lea.vmem [#allocation5], %s388
        // Predicated region
        $region53: #{tpu_custom_call.1} parent=47 // pred_check
          %p390 = pneg %p99
        $region54: #{tpu_custom_call.1} parent=47 // pred_check_branch
          %392 = sbr.rel (%p390) target = $region56
        $region55: #{tpu_custom_call.1} parent=47 // pred_region
          %393 = dma.done %s386, 64
        $region56: #{tpu_custom_call.1} parent=47 // pred_fallthru
          _
        %s394 = sand.u32 %s28, 1
        %s395 = scalar_lea.sflag [#allocation6], %s394
        %s396 = sand.u32 %s122, 1
        %s397 = smul.addr %s396, 4
        %s398 = scalar_lea.vmem [#allocation7], %s397
        // Predicated region
        $region57: #{tpu_custom_call.1} parent=47 // pred_check
          %p399 = pneg %p135
        $region58: #{tpu_custom_call.1} parent=47 // pred_check_branch
          %401 = sbr.rel (%p399) target = $region60
        $region59: #{tpu_custom_call.1} parent=47 // pred_region
          %402 = dma.done %s395, 64
        $region60: #{tpu_custom_call.1} parent=47 // pred_fallthru
          _
        // Predicated region
        $region61: #{tpu_custom_call.1} parent=47 // pred_check
          %p403 = pneg %p156
        $region62: #{tpu_custom_call.1} parent=47 // pred_check_branch
          %405 = sbr.rel (%p403) target = $region64
        $region63: #{tpu_custom_call.1} parent=47 // pred_region
          %406 = dma.done [#allocation9], 768
        $region64: #{tpu_custom_call.1} parent=47 // pred_fallthru
          _
        // Predicated region
        $region65: #{tpu_custom_call.1} parent=47 // pred_check
          %p407 = pneg %p198
        $region66: #{tpu_custom_call.1} parent=47 // pred_check_branch
          %409 = sbr.rel (%p407) target = $region68
        $region67: #{tpu_custom_call.1} parent=47 // pred_region
          %410 = dma.done [#allocation9], 32768
        $region68: #{tpu_custom_call.1} parent=47 // pred_fallthru
          _
        %s411 = sand.u32 %s50, 1
        %s412 = scalar_lea.sflag [#allocation3], %s411
        %s413 = sand.u32 %s50, 1
        %s414 = smul.addr %s413, 32
        %s415 = scalar_lea.vmem [#allocation2], %s414
        %p416 = pneg %p63
        %p417 = pneg %p60
        %s418 = sand.u32 %s28, 1
        %s419 = scalar_lea.sflag [#allocation6], %s418
        %s420 = sand.u32 %s86, 1
        %s421 = smul.addr %s420, 4
        %s422 = scalar_lea.vmem [#allocation5], %s421
        %p423 = pneg %p99
        %p424 = pneg %p96
        %s425 = sand.u32 %s28, 1
        %s426 = scalar_lea.sflag [#allocation6], %s425
        %s427 = sand.u32 %s122, 1
        %s428 = smul.addr %s427, 4
        %s429 = scalar_lea.vmem [#allocation7], %s428
        %p430 = pneg %p135
        %p431 = pneg %p132
        %p432 = pneg %p156
        %p433 = pneg %p153
        %p434 = pneg %p177
        %p435 = pneg %p174
        %p436 = pneg %p198
        %p437 = pneg %p195
        %p438 = pneg %p219
        %p439 = pneg %p216
        %p440 = pneg %p247
        %p441 = pneg %p244
        %s442 = sand.u32 %s234, 1
        %s443 = scalar_lea.sflag [#allocation4], %s442
        %s444 = sand.u32 %s234, 1
        %s445 = smul.addr %s444, 32
        %s446 = scalar_lea.vmem [#allocation11], %s445
        %s447 = smul.u32 %s33, 8
        %s448 = ssub.s32 %s447, 1
        %p449 = scmp.gt.s32.totalorder %s448, 0
        %s450 = scalar_select %p449, %s448, 0
        %s451 = smul.u32 %s33, 8
        %s452 = sadd.s32 %s451, 8
        %p453 = scmp.lt.s32.totalorder %s452, 15
        %s454 = scalar_select %p453, %s452, 15
        %v455 = vld [vmem:[%s380] sm:$0xff]
        %v456 = vld [vmem:[%s380 + $0x8] sm:$0xff]
        %v457 = vld [vmem:[%s380 + $0x10] sm:$0xff]
        %v458 = vld [vmem:[%s380 + $0x18] sm:$0xff]
        %v459 = vld [vmem:[#allocation8] sm:$0x77]
        %v460 = vld [vmem:[#allocation8 + $0x8] sm:$0x77]
        %v461 = vld [vmem:[#allocation8 + $0x10] sm:$0x77]
        %v462 = vld [vmem:[#allocation8 + $0x18] sm:$0x77]
        %v463 = vld [vmem:[#allocation8 + $0x20] sm:$0x77]
        %v464 = vld [vmem:[#allocation8 + $0x28] sm:$0x77]
        %v465 = vld [vmem:[%s4] sm:$0xf]
        %v466 = vld [vmem:[%s6] sm:$0xf]
        %471 = vrot.lane.b32.xlu0 %v455, 32
        %v472 = vpop.permute.xlu0 %471
        %473 = vrot.lane.b32.xlu0 %v456, 32
        %v474 = vpop.permute.xlu0 %473
        %475 = vrot.lane.b32.xlu0 %v457, 32
        %v476 = vpop.permute.xlu0 %475
        %477 = vrot.lane.b32.xlu0 %v458, 32
        %v478 = vpop.permute.xlu0 %477
        %vm479 = vcmask 261120
        %v480 = vsel %vm479, %v472, %v474
        %v481 = vsel %vm479, %v474, %v476
        %v482 = vsel %vm479, %v476, %v478
        %v487 = vsel %vm479, 0.0, %v472
        %488 = vrot.lane.b32.xlu0 %v455, 96
        %v489 = vpop.permute.xlu0 %488
        %490 = vrot.lane.b32.xlu0 %v456, 96
        %v491 = vpop.permute.xlu0 %490
        %492 = vrot.lane.b32.xlu0 %v457, 96
        %v493 = vpop.permute.xlu0 %492
        %494 = vrot.lane.b32.xlu0 %v458, 96
        %v495 = vpop.permute.xlu0 %494
        %vm496 = vcmask 785408
        %v497 = vsel %vm496, %v489, %v491
        %v498 = vsel %vm496, %v491, %v493
        %v499 = vsel %vm496, %v493, %v495
        %v504 = vsel %vm496, %v495, 0.0
        %v507 = vlaneseq
        %v508 = vshrl.u32 %v507, 7
        %v509 = vsub.s32 0, %v508
        %v510 = vrot.slane %v461, %v509
        %v511 = vlaneseq
        %v512 = vshrl.u32 %v511, 7
        %v513 = vsub.s32 4, %v512
        %v514 = vrot.slane %v461, %v513
        %v515 = vlaneseq
        %v516 = vshrl.u32 %v515, 7
        %v517 = vsub.s32 0, %v516
        %v518 = vrot.slane %v462, %v517
        %v519 = vlaneseq
        %v520 = vshrl.u32 %v519, 7
        %v521 = vsub.s32 4, %v520
        %v522 = vrot.slane %v462, %v521
        %v527 = vlaneseq
        %v528 = vshrl.u32 %v527, 7
        %v529 = vsub.s32 0, %v528
        %v530 = vrot.slane %v510, %v529
        %v531 = vlaneseq
        %v532 = vshrl.u32 %v531, 7
        %v533 = vsub.s32 0, %v532
        %v534 = vrot.slane %v514, %v533
        %v535 = vlaneseq
        %v536 = vshrl.u32 %v535, 7
        %v537 = vsub.s32 0, %v536
        %v538 = vrot.slane %v518, %v537
        %v539 = vlaneseq
        %v540 = vshrl.u32 %v539, 7
        %v541 = vsub.s32 0, %v540
        %v542 = vrot.slane %v522, %v541
        %v543 = vmul.f32 %v487, %v530
        %v544 = vmul.f32 %v480, %v534
        %v545 = vmul.f32 %v481, %v538
        %v546 = vmul.f32 %v482, %v542
        %v547 = vlaneseq
        %v548 = vshrl.u32 %v547, 7
        %v549 = vsub.s32 1, %v548
        %v550 = vrot.slane %v461, %v549
        %v551 = vlaneseq
        %v552 = vshrl.u32 %v551, 7
        %v553 = vsub.s32 5, %v552
        %v554 = vrot.slane %v461, %v553
        %v555 = vlaneseq
        %v556 = vshrl.u32 %v555, 7
        %v557 = vsub.s32 1, %v556
        %v558 = vrot.slane %v462, %v557
        %v559 = vlaneseq
        %v560 = vshrl.u32 %v559, 7
        %v561 = vsub.s32 5, %v560
        %v562 = vrot.slane %v462, %v561
        %v567 = vlaneseq
        %v568 = vshrl.u32 %v567, 7
        %v569 = vsub.s32 1, %v568
        %v570 = vrot.slane %v550, %v569
        %v571 = vlaneseq
        %v572 = vshrl.u32 %v571, 7
        %v573 = vsub.s32 1, %v572
        %v574 = vrot.slane %v554, %v573
        %v575 = vlaneseq
        %v576 = vshrl.u32 %v575, 7
        %v577 = vsub.s32 1, %v576
        %v578 = vrot.slane %v558, %v577
        %v579 = vlaneseq
        %v580 = vshrl.u32 %v579, 7
        %v581 = vsub.s32 1, %v580
        %v582 = vrot.slane %v562, %v581
        %v583 = vmul.f32 %v455, %v570
        %v584 = vmul.f32 %v456, %v574
        %v585 = vmul.f32 %v457, %v578
        %v586 = vmul.f32 %v458, %v582
        %v587 = vadd.f32 %v543, %v583
        %v588 = vadd.f32 %v544, %v584
        %v589 = vadd.f32 %v545, %v585
        %v590 = vadd.f32 %v546, %v586
        %v591 = vlaneseq
        %v592 = vshrl.u32 %v591, 7
        %v593 = vsub.s32 2, %v592
        %v594 = vrot.slane %v461, %v593
        %v595 = vlaneseq
        %v596 = vshrl.u32 %v595, 7
        %v597 = vsub.s32 6, %v596
        %v598 = vrot.slane %v461, %v597
        %v599 = vlaneseq
        %v600 = vshrl.u32 %v599, 7
        %v601 = vsub.s32 2, %v600
        %v602 = vrot.slane %v462, %v601
        %v603 = vlaneseq
        %v604 = vshrl.u32 %v603, 7
        %v605 = vsub.s32 6, %v604
        %v606 = vrot.slane %v462, %v605
        %v611 = vlaneseq
        %v612 = vshrl.u32 %v611, 7
        %v613 = vsub.s32 2, %v612
        %v614 = vrot.slane %v594, %v613
        %v615 = vlaneseq
        %v616 = vshrl.u32 %v615, 7
        %v617 = vsub.s32 2, %v616
        %v618 = vrot.slane %v598, %v617
        %v619 = vlaneseq
        %v620 = vshrl.u32 %v619, 7
        %v621 = vsub.s32 2, %v620
        %v622 = vrot.slane %v602, %v621
        %v623 = vlaneseq
        %v624 = vshrl.u32 %v623, 7
        %v625 = vsub.s32 2, %v624
        %v626 = vrot.slane %v606, %v625
        %v627 = vmul.f32 %v497, %v614
        %v628 = vmul.f32 %v498, %v618
        %v629 = vmul.f32 %v499, %v622
        %v630 = vmul.f32 %v504, %v626
        %v631 = vadd.f32 %v587, %v627
        %v632 = vadd.f32 %v588, %v628
        %v633 = vadd.f32 %v589, %v629
        %v634 = vadd.f32 %v590, %v630
        %v635 = vld [vmem:[%s389] sm:$0xf]
        %p636 = scmp.gt.s32.totalorder %s33, 0
        %s637 = scalar_select %p636, 1.0, 0.0
        %v638 = vstv %s637
        %v639 = vmul.f32 %v635, %v638
        %v641 = vlaneseq
        %v642 = vshrl.u32 %v641, 7
        %v643 = vsub.s32 0, %v642
        %v644 = vrot.slane %v639, %v643
        %v645 = vlaneseq
        %v646 = vshrl.u32 %v645, 7
        %v647 = vsub.s32 1, %v646
        %v648 = vrot.slane %v639, %v647
        %v649 = vlaneseq
        %v650 = vshrl.u32 %v649, 7
        %v651 = vsub.s32 2, %v650
        %v652 = vrot.slane %v639, %v651
        %v653 = vlaneseq
        %v654 = vshrl.u32 %v653, 7
        %v655 = vsub.s32 3, %v654
        %v656 = vrot.slane %v639, %v655
        %v661 = vrot.slane %v455, 7
        %v662 = vrot.slane %v456, 7
        %v663 = vrot.slane %v457, 7
        %v664 = vrot.slane %v458, 7
        %vm669 = vcmask 1040384
        %v670 = vsel %vm669, %v644, %v661
        %v671 = vsel %vm669, %v648, %v662
        %v672 = vsel %vm669, %v652, %v663
        %v673 = vsel %vm669, %v656, %v664
        %678 = vrot.lane.b32.xlu0 %v670, 32
        %v679 = vpop.permute.xlu0 %678
        %680 = vrot.lane.b32.xlu0 %v671, 32
        %v681 = vpop.permute.xlu0 %680
        %682 = vrot.lane.b32.xlu0 %v672, 32
        %v683 = vpop.permute.xlu0 %682
        %684 = vrot.lane.b32.xlu0 %v673, 32
        %v685 = vpop.permute.xlu0 %684
        %v686 = vsel %vm479, %v679, %v681
        %v687 = vsel %vm479, %v681, %v683
        %v688 = vsel %vm479, %v683, %v685
        %v693 = vsel %vm479, 0.0, %v679
        %694 = vrot.lane.b32.xlu0 %v670, 96
        %v695 = vpop.permute.xlu0 %694
        %696 = vrot.lane.b32.xlu0 %v671, 96
        %v697 = vpop.permute.xlu0 %696
        %698 = vrot.lane.b32.xlu0 %v672, 96
        %v699 = vpop.permute.xlu0 %698
        %700 = vrot.lane.b32.xlu0 %v673, 96
        %v701 = vpop.permute.xlu0 %700
        %v702 = vsel %vm496, %v695, %v697
        %v703 = vsel %vm496, %v697, %v699
        %v704 = vsel %vm496, %v699, %v701
        %v709 = vsel %vm496, %v701, 0.0
        %v712 = vlaneseq
        %v713 = vshrl.u32 %v712, 7
        %v714 = vsub.s32 0, %v713
        %v715 = vrot.slane %v459, %v714
        %v716 = vlaneseq
        %v717 = vshrl.u32 %v716, 7
        %v718 = vsub.s32 4, %v717
        %v719 = vrot.slane %v459, %v718
        %v720 = vlaneseq
        %v721 = vshrl.u32 %v720, 7
        %v722 = vsub.s32 0, %v721
        %v723 = vrot.slane %v460, %v722
        %v724 = vlaneseq
        %v725 = vshrl.u32 %v724, 7
        %v726 = vsub.s32 4, %v725
        %v727 = vrot.slane %v460, %v726
        %v732 = vlaneseq
        %v733 = vshrl.u32 %v732, 7
        %v734 = vsub.s32 0, %v733
        %v735 = vrot.slane %v715, %v734
        %v736 = vlaneseq
        %v737 = vshrl.u32 %v736, 7
        %v738 = vsub.s32 0, %v737
        %v739 = vrot.slane %v719, %v738
        %v740 = vlaneseq
        %v741 = vshrl.u32 %v740, 7
        %v742 = vsub.s32 0, %v741
        %v743 = vrot.slane %v723, %v742
        %v744 = vlaneseq
        %v745 = vshrl.u32 %v744, 7
        %v746 = vsub.s32 0, %v745
        %v747 = vrot.slane %v727, %v746
        %v748 = vmul.f32 %v693, %v735
        %v749 = vmul.f32 %v686, %v739
        %v750 = vmul.f32 %v687, %v743
        %v751 = vmul.f32 %v688, %v747
        %v752 = vlaneseq
        %v753 = vshrl.u32 %v752, 7
        %v754 = vsub.s32 1, %v753
        %v755 = vrot.slane %v459, %v754
        %v756 = vlaneseq
        %v757 = vshrl.u32 %v756, 7
        %v758 = vsub.s32 5, %v757
        %v759 = vrot.slane %v459, %v758
        %v760 = vlaneseq
        %v761 = vshrl.u32 %v760, 7
        %v762 = vsub.s32 1, %v761
        %v763 = vrot.slane %v460, %v762
        %v764 = vlaneseq
        %v765 = vshrl.u32 %v764, 7
        %v766 = vsub.s32 5, %v765
        %v767 = vrot.slane %v460, %v766
        %v772 = vlaneseq
        %v773 = vshrl.u32 %v772, 7
        %v774 = vsub.s32 1, %v773
        %v775 = vrot.slane %v755, %v774
        %v776 = vlaneseq
        %v777 = vshrl.u32 %v776, 7
        %v778 = vsub.s32 1, %v777
        %v779 = vrot.slane %v759, %v778
        %v780 = vlaneseq
        %v781 = vshrl.u32 %v780, 7
        %v782 = vsub.s32 1, %v781
        %v783 = vrot.slane %v763, %v782
        %v784 = vlaneseq
        %v785 = vshrl.u32 %v784, 7
        %v786 = vsub.s32 1, %v785
        %v787 = vrot.slane %v767, %v786
        %v788 = vmul.f32 %v670, %v775
        %v789 = vmul.f32 %v671, %v779
        %v790 = vmul.f32 %v672, %v783
        %v791 = vmul.f32 %v673, %v787
        %v792 = vadd.f32 %v748, %v788
        %v793 = vadd.f32 %v749, %v789
        %v794 = vadd.f32 %v750, %v790
        %v795 = vadd.f32 %v751, %v791
        %v796 = vlaneseq
        %v797 = vshrl.u32 %v796, 7
        %v798 = vsub.s32 2, %v797
        %v799 = vrot.slane %v459, %v798
        %v800 = vlaneseq
        %v801 = vshrl.u32 %v800, 7
        %v802 = vsub.s32 6, %v801
        %v803 = vrot.slane %v459, %v802
        %v804 = vlaneseq
        %v805 = vshrl.u32 %v804, 7
        %v806 = vsub.s32 2, %v805
        %v807 = vrot.slane %v460, %v806
        %v808 = vlaneseq
        %v809 = vshrl.u32 %v808, 7
        %v810 = vsub.s32 6, %v809
        %v811 = vrot.slane %v460, %v810
        %v816 = vlaneseq
        %v817 = vshrl.u32 %v816, 7
        %v818 = vsub.s32 2, %v817
        %v819 = vrot.slane %v799, %v818
        %v820 = vlaneseq
        %v821 = vshrl.u32 %v820, 7
        %v822 = vsub.s32 2, %v821
        %v823 = vrot.slane %v803, %v822
        %v824 = vlaneseq
        %v825 = vshrl.u32 %v824, 7
        %v826 = vsub.s32 2, %v825
        %v827 = vrot.slane %v807, %v826
        %v828 = vlaneseq
        %v829 = vshrl.u32 %v828, 7
        %v830 = vsub.s32 2, %v829
        %v831 = vrot.slane %v811, %v830
        %v832 = vmul.f32 %v702, %v819
        %v833 = vmul.f32 %v703, %v823
        %v834 = vmul.f32 %v704, %v827
        %v835 = vmul.f32 %v709, %v831
        %v836 = vadd.f32 %v792, %v832
        %v837 = vadd.f32 %v793, %v833
        %v838 = vadd.f32 %v794, %v834
        %v839 = vadd.f32 %v795, %v835
        %v840 = vadd.f32 %v631, %v836
        %v841 = vadd.f32 %v632, %v837
        %v842 = vadd.f32 %v633, %v838
        %v843 = vadd.f32 %v634, %v839
        %v844 = vld [vmem:[%s398] sm:$0xf]
        %p845 = scmp.lt.s32.totalorder %s33, 1
        %s846 = scalar_select %p845, 1.0, 0.0
        %v847 = vstv %s846
        %v848 = vmul.f32 %v844, %v847
        %v849 = vrot.slane %v455, 1
        %v850 = vrot.slane %v456, 1
        %v851 = vrot.slane %v457, 1
        %v852 = vrot.slane %v458, 1
        %v858 = vlaneseq
        %v859 = vshrl.u32 %v858, 7
        %v860 = vsub.s32 0, %v859
        %v861 = vrot.slane %v848, %v860
        %v862 = vlaneseq
        %v863 = vshrl.u32 %v862, 7
        %v864 = vsub.s32 1, %v863
        %v865 = vrot.slane %v848, %v864
        %v866 = vlaneseq
        %v867 = vshrl.u32 %v866, 7
        %v868 = vsub.s32 2, %v867
        %v869 = vrot.slane %v848, %v868
        %v870 = vlaneseq
        %v871 = vshrl.u32 %v870, 7
        %v872 = vsub.s32 3, %v871
        %v873 = vrot.slane %v848, %v872
        %vm878 = vcmask 1046528
        %v879 = vsel %vm878, %v849, %v861
        %v880 = vsel %vm878, %v850, %v865
        %v881 = vsel %vm878, %v851, %v869
        %v882 = vsel %vm878, %v852, %v873
        %887 = vrot.lane.b32.xlu0 %v879, 32
        %v888 = vpop.permute.xlu0 %887
        %889 = vrot.lane.b32.xlu0 %v880, 32
        %v890 = vpop.permute.xlu0 %889
        %891 = vrot.lane.b32.xlu0 %v881, 32
        %v892 = vpop.permute.xlu0 %891
        %893 = vrot.lane.b32.xlu0 %v882, 32
        %v894 = vpop.permute.xlu0 %893
        %v895 = vsel %vm479, %v888, %v890
        %v896 = vsel %vm479, %v890, %v892
        %v897 = vsel %vm479, %v892, %v894
        %v902 = vsel %vm479, 0.0, %v888
        %903 = vrot.lane.b32.xlu0 %v879, 96
        %v904 = vpop.permute.xlu0 %903
        %905 = vrot.lane.b32.xlu0 %v880, 96
        %v906 = vpop.permute.xlu0 %905
        %907 = vrot.lane.b32.xlu0 %v881, 96
        %v908 = vpop.permute.xlu0 %907
        %909 = vrot.lane.b32.xlu0 %v882, 96
        %v910 = vpop.permute.xlu0 %909
        %v911 = vsel %vm496, %v904, %v906
        %v912 = vsel %vm496, %v906, %v908
        %v913 = vsel %vm496, %v908, %v910
        %v918 = vsel %vm496, %v910, 0.0
        %v921 = vlaneseq
        %v922 = vshrl.u32 %v921, 7
        %v923 = vsub.s32 0, %v922
        %v924 = vrot.slane %v463, %v923
        %v925 = vlaneseq
        %v926 = vshrl.u32 %v925, 7
        %v927 = vsub.s32 4, %v926
        %v928 = vrot.slane %v463, %v927
        %v929 = vlaneseq
        %v930 = vshrl.u32 %v929, 7
        %v931 = vsub.s32 0, %v930
        %v932 = vrot.slane %v464, %v931
        %v933 = vlaneseq
        %v934 = vshrl.u32 %v933, 7
        %v935 = vsub.s32 4, %v934
        %v936 = vrot.slane %v464, %v935
        %v941 = vlaneseq
        %v942 = vshrl.u32 %v941, 7
        %v943 = vsub.s32 0, %v942
        %v944 = vrot.slane %v924, %v943
        %v945 = vlaneseq
        %v946 = vshrl.u32 %v945, 7
        %v947 = vsub.s32 0, %v946
        %v948 = vrot.slane %v928, %v947
        %v949 = vlaneseq
        %v950 = vshrl.u32 %v949, 7
        %v951 = vsub.s32 0, %v950
        %v952 = vrot.slane %v932, %v951
        %v953 = vlaneseq
        %v954 = vshrl.u32 %v953, 7
        %v955 = vsub.s32 0, %v954
        %v956 = vrot.slane %v936, %v955
        %v957 = vmul.f32 %v902, %v944
        %v958 = vmul.f32 %v895, %v948
        %v959 = vmul.f32 %v896, %v952
        %v960 = vmul.f32 %v897, %v956
        %v961 = vlaneseq
        %v962 = vshrl.u32 %v961, 7
        %v963 = vsub.s32 1, %v962
        %v964 = vrot.slane %v463, %v963
        %v965 = vlaneseq
        %v966 = vshrl.u32 %v965, 7
        %v967 = vsub.s32 5, %v966
        %v968 = vrot.slane %v463, %v967
        %v969 = vlaneseq
        %v970 = vshrl.u32 %v969, 7
        %v971 = vsub.s32 1, %v970
        %v972 = vrot.slane %v464, %v971
        %v973 = vlaneseq
        %v974 = vshrl.u32 %v973, 7
        %v975 = vsub.s32 5, %v974
        %v976 = vrot.slane %v464, %v975
        %v981 = vlaneseq
        %v982 = vshrl.u32 %v981, 7
        %v983 = vsub.s32 1, %v982
        %v984 = vrot.slane %v964, %v983
        %v985 = vlaneseq
        %v986 = vshrl.u32 %v985, 7
        %v987 = vsub.s32 1, %v986
        %v988 = vrot.slane %v968, %v987
        %v989 = vlaneseq
        %v990 = vshrl.u32 %v989, 7
        %v991 = vsub.s32 1, %v990
        %v992 = vrot.slane %v972, %v991
        %v993 = vlaneseq
        %v994 = vshrl.u32 %v993, 7
        %v995 = vsub.s32 1, %v994
        %v996 = vrot.slane %v976, %v995
        %v997 = vmul.f32 %v879, %v984
        %v998 = vmul.f32 %v880, %v988
        %v999 = vmul.f32 %v881, %v992
        %v1000 = vmul.f32 %v882, %v996
        %v1001 = vadd.f32 %v957, %v997
        %v1002 = vadd.f32 %v958, %v998
        %v1003 = vadd.f32 %v959, %v999
        %v1004 = vadd.f32 %v960, %v1000
        %v1005 = vlaneseq
        %v1006 = vshrl.u32 %v1005, 7
        %v1007 = vsub.s32 2, %v1006
        %v1008 = vrot.slane %v463, %v1007
        %v1009 = vlaneseq
        %v1010 = vshrl.u32 %v1009, 7
        %v1011 = vsub.s32 6, %v1010
        %v1012 = vrot.slane %v463, %v1011
        %v1013 = vlaneseq
        %v1014 = vshrl.u32 %v1013, 7
        %v1015 = vsub.s32 2, %v1014
        %v1016 = vrot.slane %v464, %v1015
        %v1017 = vlaneseq
        %v1018 = vshrl.u32 %v1017, 7
        %v1019 = vsub.s32 6, %v1018
        %v1020 = vrot.slane %v464, %v1019
        %v1025 = vlaneseq
        %v1026 = vshrl.u32 %v1025, 7
        %v1027 = vsub.s32 2, %v1026
        %v1028 = vrot.slane %v1008, %v1027
        %v1029 = vlaneseq
        %v1030 = vshrl.u32 %v1029, 7
        %v1031 = vsub.s32 2, %v1030
        %v1032 = vrot.slane %v1012, %v1031
        %v1033 = vlaneseq
        %v1034 = vshrl.u32 %v1033, 7
        %v1035 = vsub.s32 2, %v1034
        %v1036 = vrot.slane %v1016, %v1035
        %v1037 = vlaneseq
        %v1038 = vshrl.u32 %v1037, 7
        %v1039 = vsub.s32 2, %v1038
        %v1040 = vrot.slane %v1020, %v1039
        %v1041 = vmul.f32 %v911, %v1028
        %v1042 = vmul.f32 %v912, %v1032
        %v1043 = vmul.f32 %v913, %v1036
        %v1044 = vmul.f32 %v918, %v1040
        %v1045 = vadd.f32 %v1001, %v1041
        %v1046 = vadd.f32 %v1002, %v1042
        %v1047 = vadd.f32 %v1003, %v1043
        %v1048 = vadd.f32 %v1004, %v1044
        %v1049 = vadd.f32 %v840, %v1045
        %v1050 = vadd.f32 %v841, %v1046
        %v1051 = vadd.f32 %v842, %v1047
        %v1052 = vadd.f32 %v843, %v1048
        %v1054 = vlaneseq
        %v1055 = vshrl.u32 %v1054, 7
        %v1056 = vsub.s32 0, %v1055
        %v1057 = vrot.slane %v465, %v1056
        %v1058 = vlaneseq
        %v1059 = vshrl.u32 %v1058, 7
        %v1060 = vsub.s32 1, %v1059
        %v1061 = vrot.slane %v465, %v1060
        %v1062 = vlaneseq
        %v1063 = vshrl.u32 %v1062, 7
        %v1064 = vsub.s32 2, %v1063
        %v1065 = vrot.slane %v465, %v1064
        %v1066 = vlaneseq
        %v1067 = vshrl.u32 %v1066, 7
        %v1068 = vsub.s32 3, %v1067
        %v1069 = vrot.slane %v465, %v1068
        %v1074 = vadd.f32 %v1049, %v1057
        %v1075 = vadd.f32 %v1050, %v1061
        %v1076 = vadd.f32 %v1051, %v1065
        %v1077 = vadd.f32 %v1052, %v1069
        %v1078 = vmax.f32 %v1074, 0.0
        %v1079 = vmax.f32 %v1075, 0.0
        %v1080 = vmax.f32 %v1076, 0.0
        %v1081 = vmax.f32 %v1077, 0.0
        %v1082 = vld [vmem:[#allocation10] sm:$0xff]
        %v1083 = vld [vmem:[#allocation10 + $0x8] sm:$0xff]
        %v1084 = vld [vmem:[#allocation10 + $0x10] sm:$0xff]
        %v1085 = vld [vmem:[#allocation10 + $0x18] sm:$0xff]
        %v1086 = vld [vmem:[#allocation10 + $0x20] sm:$0xff]
        %v1087 = vld [vmem:[#allocation10 + $0x28] sm:$0xff]
        %v1088 = vld [vmem:[#allocation10 + $0x30] sm:$0xff]
        %v1089 = vld [vmem:[#allocation10 + $0x38] sm:$0xff]
        %v1090 = vld [vmem:[#allocation10 + $0x40] sm:$0xff]
        %v1091 = vld [vmem:[#allocation10 + $0x48] sm:$0xff]
        %v1092 = vld [vmem:[#allocation10 + $0x50] sm:$0xff]
        %v1093 = vld [vmem:[#allocation10 + $0x58] sm:$0xff]
        %v1094 = vld [vmem:[#allocation10 + $0x60] sm:$0xff]
        %v1095 = vld [vmem:[#allocation10 + $0x68] sm:$0xff]
        %v1096 = vld [vmem:[#allocation10 + $0x70] sm:$0xff]
        %v1097 = vld [vmem:[#allocation10 + $0x78] sm:$0xff]
        %v1098 = vld [vmem:[#allocation10 + $0x80] sm:$0xff]
        %v1099 = vld [vmem:[#allocation10 + $0x88] sm:$0xff]
        %v1100 = vld [vmem:[#allocation10 + $0x90] sm:$0xff]
        %v1101 = vld [vmem:[#allocation10 + $0x98] sm:$0xff]
        %v1102 = vld [vmem:[#allocation10 + $0xa0] sm:$0xff]
        %v1103 = vld [vmem:[#allocation10 + $0xa8] sm:$0xff]
        %v1104 = vld [vmem:[#allocation10 + $0xb0] sm:$0xff]
        %v1105 = vld [vmem:[#allocation10 + $0xb8] sm:$0xff]
        %v1106 = vld [vmem:[#allocation10 + $0xc0] sm:$0xff]
        %v1107 = vld [vmem:[#allocation10 + $0xc8] sm:$0xff]
        %v1108 = vld [vmem:[#allocation10 + $0xd0] sm:$0xff]
        %v1109 = vld [vmem:[#allocation10 + $0xd8] sm:$0xff]
        %v1110 = vld [vmem:[#allocation10 + $0xe0] sm:$0xff]
        %v1111 = vld [vmem:[#allocation10 + $0xe8] sm:$0xff]
        %v1112 = vld [vmem:[#allocation10 + $0xf0] sm:$0xff]
        %v1113 = vld [vmem:[#allocation10 + $0xf8] sm:$0xff]
        %v1114 = vld [vmem:[#allocation10 + $0x100] sm:$0xff]
        %v1115 = vld [vmem:[#allocation10 + $0x108] sm:$0xff]
        %v1116 = vld [vmem:[#allocation10 + $0x110] sm:$0xff]
        %v1117 = vld [vmem:[#allocation10 + $0x118] sm:$0xff]
        %v1118 = vld [vmem:[#allocation10 + $0x120] sm:$0xff]
        %v1119 = vld [vmem:[#allocation10 + $0x128] sm:$0xff]
        %v1120 = vld [vmem:[#allocation10 + $0x130] sm:$0xff]
        %v1121 = vld [vmem:[#allocation10 + $0x138] sm:$0xff]
        %v1122 = vld [vmem:[#allocation10 + $0x140] sm:$0xff]
        %v1123 = vld [vmem:[#allocation10 + $0x148] sm:$0xff]
        %v1124 = vld [vmem:[#allocation10 + $0x150] sm:$0xff]
        %v1125 = vld [vmem:[#allocation10 + $0x158] sm:$0xff]
        %v1126 = vld [vmem:[#allocation10 + $0x160] sm:$0xff]
        %v1127 = vld [vmem:[#allocation10 + $0x168] sm:$0xff]
        %v1128 = vld [vmem:[#allocation10 + $0x170] sm:$0xff]
        %v1129 = vld [vmem:[#allocation10 + $0x178] sm:$0xff]
        %v1130 = vld [vmem:[#allocation10 + $0x180] sm:$0xff]
        %v1131 = vld [vmem:[#allocation10 + $0x188] sm:$0xff]
        %v1132 = vld [vmem:[#allocation10 + $0x190] sm:$0xff]
        %v1133 = vld [vmem:[#allocation10 + $0x198] sm:$0xff]
        %v1134 = vld [vmem:[#allocation10 + $0x1a0] sm:$0xff]
        %v1135 = vld [vmem:[#allocation10 + $0x1a8] sm:$0xff]
        %v1136 = vld [vmem:[#allocation10 + $0x1b0] sm:$0xff]
        %v1137 = vld [vmem:[#allocation10 + $0x1b8] sm:$0xff]
        %v1138 = vld [vmem:[#allocation10 + $0x1c0] sm:$0xff]
        %v1139 = vld [vmem:[#allocation10 + $0x1c8] sm:$0xff]
        %v1140 = vld [vmem:[#allocation10 + $0x1d0] sm:$0xff]
        %v1141 = vld [vmem:[#allocation10 + $0x1d8] sm:$0xff]
        %v1142 = vld [vmem:[#allocation10 + $0x1e0] sm:$0xff]
        %v1143 = vld [vmem:[#allocation10 + $0x1e8] sm:$0xff]
        %v1144 = vld [vmem:[#allocation10 + $0x1f0] sm:$0xff]
        %v1145 = vld [vmem:[#allocation10 + $0x1f8] sm:$0xff]
        %v1146 = vld [vmem:[#allocation10 + $0x200] sm:$0xff]
        %v1147 = vld [vmem:[#allocation10 + $0x208] sm:$0xff]
        %v1148 = vld [vmem:[#allocation10 + $0x210] sm:$0xff]
        %v1149 = vld [vmem:[#allocation10 + $0x218] sm:$0xff]
        %v1150 = vld [vmem:[#allocation10 + $0x220] sm:$0xff]
        %v1151 = vld [vmem:[#allocation10 + $0x228] sm:$0xff]
        %v1152 = vld [vmem:[#allocation10 + $0x230] sm:$0xff]
        %v1153 = vld [vmem:[#allocation10 + $0x238] sm:$0xff]
        %v1154 = vld [vmem:[#allocation10 + $0x240] sm:$0xff]
        %v1155 = vld [vmem:[#allocation10 + $0x248] sm:$0xff]
        %v1156 = vld [vmem:[#allocation10 + $0x250] sm:$0xff]
        %v1157 = vld [vmem:[#allocation10 + $0x258] sm:$0xff]
        %v1158 = vld [vmem:[#allocation10 + $0x260] sm:$0xff]
        %v1159 = vld [vmem:[#allocation10 + $0x268] sm:$0xff]
        %v1160 = vld [vmem:[#allocation10 + $0x270] sm:$0xff]
        %v1161 = vld [vmem:[#allocation10 + $0x278] sm:$0xff]
        %v1162 = vld [vmem:[#allocation10 + $0x280] sm:$0xff]
        %v1163 = vld [vmem:[#allocation10 + $0x288] sm:$0xff]
        %v1164 = vld [vmem:[#allocation10 + $0x290] sm:$0xff]
        %v1165 = vld [vmem:[#allocation10 + $0x298] sm:$0xff]
        %v1166 = vld [vmem:[#allocation10 + $0x2a0] sm:$0xff]
        %v1167 = vld [vmem:[#allocation10 + $0x2a8] sm:$0xff]
        %v1168 = vld [vmem:[#allocation10 + $0x2b0] sm:$0xff]
        %v1169 = vld [vmem:[#allocation10 + $0x2b8] sm:$0xff]
        %v1170 = vld [vmem:[#allocation10 + $0x2c0] sm:$0xff]
        %v1171 = vld [vmem:[#allocation10 + $0x2c8] sm:$0xff]
        %v1172 = vld [vmem:[#allocation10 + $0x2d0] sm:$0xff]
        %v1173 = vld [vmem:[#allocation10 + $0x2d8] sm:$0xff]
        %v1174 = vld [vmem:[#allocation10 + $0x2e0] sm:$0xff]
        %v1175 = vld [vmem:[#allocation10 + $0x2e8] sm:$0xff]
        %v1176 = vld [vmem:[#allocation10 + $0x2f0] sm:$0xff]
        %v1177 = vld [vmem:[#allocation10 + $0x2f8] sm:$0xff]
        %v1178 = vld [vmem:[#allocation10 + $0x300] sm:$0xff]
        %v1179 = vld [vmem:[#allocation10 + $0x308] sm:$0xff]
        %v1180 = vld [vmem:[#allocation10 + $0x310] sm:$0xff]
        %v1181 = vld [vmem:[#allocation10 + $0x318] sm:$0xff]
        %v1182 = vld [vmem:[#allocation10 + $0x320] sm:$0xff]
        %v1183 = vld [vmem:[#allocation10 + $0x328] sm:$0xff]
        %v1184 = vld [vmem:[#allocation10 + $0x330] sm:$0xff]
        %v1185 = vld [vmem:[#allocation10 + $0x338] sm:$0xff]
        %v1186 = vld [vmem:[#allocation10 + $0x340] sm:$0xff]
        %v1187 = vld [vmem:[#allocation10 + $0x348] sm:$0xff]
        %v1188 = vld [vmem:[#allocation10 + $0x350] sm:$0xff]
        %v1189 = vld [vmem:[#allocation10 + $0x358] sm:$0xff]
        %v1190 = vld [vmem:[#allocation10 + $0x360] sm:$0xff]
        %v1191 = vld [vmem:[#allocation10 + $0x368] sm:$0xff]
        %v1192 = vld [vmem:[#allocation10 + $0x370] sm:$0xff]
        %v1193 = vld [vmem:[#allocation10 + $0x378] sm:$0xff]
        %v1194 = vld [vmem:[#allocation10 + $0x380] sm:$0xff]
        %v1195 = vld [vmem:[#allocation10 + $0x388] sm:$0xff]
        %v1196 = vld [vmem:[#allocation10 + $0x390] sm:$0xff]
        %v1197 = vld [vmem:[#allocation10 + $0x398] sm:$0xff]
        %v1198 = vld [vmem:[#allocation10 + $0x3a0] sm:$0xff]
        %v1199 = vld [vmem:[#allocation10 + $0x3a8] sm:$0xff]
        %v1200 = vld [vmem:[#allocation10 + $0x3b0] sm:$0xff]
        %v1201 = vld [vmem:[#allocation10 + $0x3b8] sm:$0xff]
        %v1202 = vld [vmem:[#allocation10 + $0x3c0] sm:$0xff]
        %v1203 = vld [vmem:[#allocation10 + $0x3c8] sm:$0xff]
        %v1204 = vld [vmem:[#allocation10 + $0x3d0] sm:$0xff]
        %v1205 = vld [vmem:[#allocation10 + $0x3d8] sm:$0xff]
        %v1206 = vld [vmem:[#allocation10 + $0x3e0] sm:$0xff]
        %v1207 = vld [vmem:[#allocation10 + $0x3e8] sm:$0xff]
        %v1208 = vld [vmem:[#allocation10 + $0x3f0] sm:$0xff]
        %v1209 = vld [vmem:[#allocation10 + $0x3f8] sm:$0xff]
        %v1210 = vld [vmem:[#allocation10 + $0x400] sm:$0xff]
        %v1211 = vld [vmem:[#allocation10 + $0x408] sm:$0xff]
        %v1212 = vld [vmem:[#allocation10 + $0x410] sm:$0xff]
        %v1213 = vld [vmem:[#allocation10 + $0x418] sm:$0xff]
        %v1214 = vld [vmem:[#allocation10 + $0x420] sm:$0xff]
        %v1215 = vld [vmem:[#allocation10 + $0x428] sm:$0xff]
        %v1216 = vld [vmem:[#allocation10 + $0x430] sm:$0xff]
        %v1217 = vld [vmem:[#allocation10 + $0x438] sm:$0xff]
        %v1218 = vld [vmem:[#allocation10 + $0x440] sm:$0xff]
        %v1219 = vld [vmem:[#allocation10 + $0x448] sm:$0xff]
        %v1220 = vld [vmem:[#allocation10 + $0x450] sm:$0xff]
        %v1221 = vld [vmem:[#allocation10 + $0x458] sm:$0xff]
        %v1222 = vld [vmem:[#allocation10 + $0x460] sm:$0xff]
        %v1223 = vld [vmem:[#allocation10 + $0x468] sm:$0xff]
        %v1224 = vld [vmem:[#allocation10 + $0x470] sm:$0xff]
        %v1225 = vld [vmem:[#allocation10 + $0x478] sm:$0xff]
        %v1226 = vld [vmem:[#allocation10 + $0x480] sm:$0xff]
        %v1227 = vld [vmem:[#allocation10 + $0x488] sm:$0xff]
        %v1228 = vld [vmem:[#allocation10 + $0x490] sm:$0xff]
        %v1229 = vld [vmem:[#allocation10 + $0x498] sm:$0xff]
        %v1230 = vld [vmem:[#allocation10 + $0x4a0] sm:$0xff]
        %v1231 = vld [vmem:[#allocation10 + $0x4a8] sm:$0xff]
        %v1232 = vld [vmem:[#allocation10 + $0x4b0] sm:$0xff]
        %v1233 = vld [vmem:[#allocation10 + $0x4b8] sm:$0xff]
        %v1234 = vld [vmem:[#allocation10 + $0x4c0] sm:$0xff]
        %v1235 = vld [vmem:[#allocation10 + $0x4c8] sm:$0xff]
        %v1236 = vld [vmem:[#allocation10 + $0x4d0] sm:$0xff]
        %v1237 = vld [vmem:[#allocation10 + $0x4d8] sm:$0xff]
        %v1238 = vld [vmem:[#allocation10 + $0x4e0] sm:$0xff]
        %v1239 = vld [vmem:[#allocation10 + $0x4e8] sm:$0xff]
        %v1240 = vld [vmem:[#allocation10 + $0x4f0] sm:$0xff]
        %v1241 = vld [vmem:[#allocation10 + $0x4f8] sm:$0xff]
        %v1242 = vld [vmem:[#allocation10 + $0x500] sm:$0xff]
        %v1243 = vld [vmem:[#allocation10 + $0x508] sm:$0xff]
        %v1244 = vld [vmem:[#allocation10 + $0x510] sm:$0xff]
        %v1245 = vld [vmem:[#allocation10 + $0x518] sm:$0xff]
        %v1246 = vld [vmem:[#allocation10 + $0x520] sm:$0xff]
        %v1247 = vld [vmem:[#allocation10 + $0x528] sm:$0xff]
        %v1248 = vld [vmem:[#allocation10 + $0x530] sm:$0xff]
        %v1249 = vld [vmem:[#allocation10 + $0x538] sm:$0xff]
        %v1250 = vld [vmem:[#allocation10 + $0x540] sm:$0xff]
        %v1251 = vld [vmem:[#allocation10 + $0x548] sm:$0xff]
        %v1252 = vld [vmem:[#allocation10 + $0x550] sm:$0xff]
        %v1253 = vld [vmem:[#allocation10 + $0x558] sm:$0xff]
        %v1254 = vld [vmem:[#allocation10 + $0x560] sm:$0xff]
        %v1255 = vld [vmem:[#allocation10 + $0x568] sm:$0xff]
        %v1256 = vld [vmem:[#allocation10 + $0x570] sm:$0xff]
        %v1257 = vld [vmem:[#allocation10 + $0x578] sm:$0xff]
        %v1258 = vld [vmem:[#allocation10 + $0x580] sm:$0xff]
        %v1259 = vld [vmem:[#allocation10 + $0x588] sm:$0xff]
        %v1260 = vld [vmem:[#allocation10 + $0x590] sm:$0xff]
        %v1261 = vld [vmem:[#allocation10 + $0x598] sm:$0xff]
        %v1262 = vld [vmem:[#allocation10 + $0x5a0] sm:$0xff]
        %v1263 = vld [vmem:[#allocation10 + $0x5a8] sm:$0xff]
        %v1264 = vld [vmem:[#allocation10 + $0x5b0] sm:$0xff]
        %v1265 = vld [vmem:[#allocation10 + $0x5b8] sm:$0xff]
        %v1266 = vld [vmem:[#allocation10 + $0x5c0] sm:$0xff]
        %v1267 = vld [vmem:[#allocation10 + $0x5c8] sm:$0xff]
        %v1268 = vld [vmem:[#allocation10 + $0x5d0] sm:$0xff]
        %v1269 = vld [vmem:[#allocation10 + $0x5d8] sm:$0xff]
        %v1270 = vld [vmem:[#allocation10 + $0x5e0] sm:$0xff]
        %v1271 = vld [vmem:[#allocation10 + $0x5e8] sm:$0xff]
        %v1272 = vld [vmem:[#allocation10 + $0x5f0] sm:$0xff]
        %v1273 = vld [vmem:[#allocation10 + $0x5f8] sm:$0xff]
        %v1274 = vld [vmem:[#allocation10 + $0x600] sm:$0xff]
        %v1275 = vld [vmem:[#allocation10 + $0x608] sm:$0xff]
        %v1276 = vld [vmem:[#allocation10 + $0x610] sm:$0xff]
        %v1277 = vld [vmem:[#allocation10 + $0x618] sm:$0xff]
        %v1278 = vld [vmem:[#allocation10 + $0x620] sm:$0xff]
        %v1279 = vld [vmem:[#allocation10 + $0x628] sm:$0xff]
        %v1280 = vld [vmem:[#allocation10 + $0x630] sm:$0xff]
        %v1281 = vld [vmem:[#allocation10 + $0x638] sm:$0xff]
        %v1282 = vld [vmem:[#allocation10 + $0x640] sm:$0xff]
        %v1283 = vld [vmem:[#allocation10 + $0x648] sm:$0xff]
        %v1284 = vld [vmem:[#allocation10 + $0x650] sm:$0xff]
        %v1285 = vld [vmem:[#allocation10 + $0x658] sm:$0xff]
        %v1286 = vld [vmem:[#allocation10 + $0x660] sm:$0xff]
        %v1287 = vld [vmem:[#allocation10 + $0x668] sm:$0xff]
        %v1288 = vld [vmem:[#allocation10 + $0x670] sm:$0xff]
        %v1289 = vld [vmem:[#allocation10 + $0x678] sm:$0xff]
        %v1290 = vld [vmem:[#allocation10 + $0x680] sm:$0xff]
        %v1291 = vld [vmem:[#allocation10 + $0x688] sm:$0xff]
        %v1292 = vld [vmem:[#allocation10 + $0x690] sm:$0xff]
        %v1293 = vld [vmem:[#allocation10 + $0x698] sm:$0xff]
        %v1294 = vld [vmem:[#allocation10 + $0x6a0] sm:$0xff]
        %v1295 = vld [vmem:[#allocation10 + $0x6a8] sm:$0xff]
        %v1296 = vld [vmem:[#allocation10 + $0x6b0] sm:$0xff]
        %v1297 = vld [vmem:[#allocation10 + $0x6b8] sm:$0xff]
        %v1298 = vld [vmem:[#allocation10 + $0x6c0] sm:$0xff]
        %v1299 = vld [vmem:[#allocation10 + $0x6c8] sm:$0xff]
        %v1300 = vld [vmem:[#allocation10 + $0x6d0] sm:$0xff]
        %v1301 = vld [vmem:[#allocation10 + $0x6d8] sm:$0xff]
        %v1302 = vld [vmem:[#allocation10 + $0x6e0] sm:$0xff]
        %v1303 = vld [vmem:[#allocation10 + $0x6e8] sm:$0xff]
        %v1304 = vld [vmem:[#allocation10 + $0x6f0] sm:$0xff]
        %v1305 = vld [vmem:[#allocation10 + $0x6f8] sm:$0xff]
        %v1306 = vld [vmem:[#allocation10 + $0x700] sm:$0xff]
        %v1307 = vld [vmem:[#allocation10 + $0x708] sm:$0xff]
        %v1308 = vld [vmem:[#allocation10 + $0x710] sm:$0xff]
        %v1309 = vld [vmem:[#allocation10 + $0x718] sm:$0xff]
        %v1310 = vld [vmem:[#allocation10 + $0x720] sm:$0xff]
        %v1311 = vld [vmem:[#allocation10 + $0x728] sm:$0xff]
        %v1312 = vld [vmem:[#allocation10 + $0x730] sm:$0xff]
        %v1313 = vld [vmem:[#allocation10 + $0x738] sm:$0xff]
        %v1314 = vld [vmem:[#allocation10 + $0x740] sm:$0xff]
        %v1315 = vld [vmem:[#allocation10 + $0x748] sm:$0xff]
        %v1316 = vld [vmem:[#allocation10 + $0x750] sm:$0xff]
        %v1317 = vld [vmem:[#allocation10 + $0x758] sm:$0xff]
        %v1318 = vld [vmem:[#allocation10 + $0x760] sm:$0xff]
        %v1319 = vld [vmem:[#allocation10 + $0x768] sm:$0xff]
        %v1320 = vld [vmem:[#allocation10 + $0x770] sm:$0xff]
        %v1321 = vld [vmem:[#allocation10 + $0x778] sm:$0xff]
        %v1322 = vld [vmem:[#allocation10 + $0x780] sm:$0xff]
        %v1323 = vld [vmem:[#allocation10 + $0x788] sm:$0xff]
        %v1324 = vld [vmem:[#allocation10 + $0x790] sm:$0xff]
        %v1325 = vld [vmem:[#allocation10 + $0x798] sm:$0xff]
        %v1326 = vld [vmem:[#allocation10 + $0x7a0] sm:$0xff]
        %v1327 = vld [vmem:[#allocation10 + $0x7a8] sm:$0xff]
        %v1328 = vld [vmem:[#allocation10 + $0x7b0] sm:$0xff]
        %v1329 = vld [vmem:[#allocation10 + $0x7b8] sm:$0xff]
        %v1330 = vld [vmem:[#allocation10 + $0x7c0] sm:$0xff]
        %v1331 = vld [vmem:[#allocation10 + $0x7c8] sm:$0xff]
        %v1332 = vld [vmem:[#allocation10 + $0x7d0] sm:$0xff]
        %v1333 = vld [vmem:[#allocation10 + $0x7d8] sm:$0xff]
        %v1334 = vld [vmem:[#allocation10 + $0x7e0] sm:$0xff]
        %v1335 = vld [vmem:[#allocation10 + $0x7e8] sm:$0xff]
        %v1336 = vld [vmem:[#allocation10 + $0x7f0] sm:$0xff]
        %v1337 = vld [vmem:[#allocation10 + $0x7f8] sm:$0xff]
        %v1339 = vlaneseq
        %v1340 = vshrl.u32 %v1339, 7
        %v1341 = vsub.s32 0, %v1340
        %v1342 = vrot.slane %v466, %v1341
        %v1343 = vlaneseq
        %v1344 = vshrl.u32 %v1343, 7
        %v1345 = vsub.s32 1, %v1344
        %v1346 = vrot.slane %v466, %v1345
        %v1347 = vlaneseq
        %v1348 = vshrl.u32 %v1347, 7
        %v1349 = vsub.s32 2, %v1348
        %v1350 = vrot.slane %v466, %v1349
        %v1351 = vlaneseq
        %v1352 = vshrl.u32 %v1351, 7
        %v1353 = vsub.s32 3, %v1352
        %v1354 = vrot.slane %v466, %v1353
        %1359 = vmatprep.subr.mxu0 %v1083
        %1360 = vmatpush1.msra.mxu0 %v1082
        %1361 = vmatprep.subr.mxu0 %v1087
        %1362 = vmatpush1.msra.mxu0 %v1086
        %1363 = vmatprep.subr.mxu0 %v1091
        %1364 = vmatpush1.msra.mxu0 %v1090
        %1365 = vmatprep.subr.mxu0 %v1095
        %1366 = vmatpush1.msra.mxu0 %v1094
        %1367 = vmatprep.subr.mxu0 %v1099
        %1368 = vmatpush1.msra.mxu0 %v1098
        %1369 = vmatprep.subr.mxu0 %v1103
        %1370 = vmatpush1.msra.mxu0 %v1102
        %1371 = vmatprep.subr.mxu0 %v1107
        %1372 = vmatpush1.msra.mxu0 %v1106
        %1373 = vmatprep.subr.mxu0 %v1111
        %1374 = vmatpush1.msra.mxu0 %v1110
        %1375 = vmatprep.subr.mxu0 %v1115
        %1376 = vmatpush1.msra.mxu0 %v1114
        %1377 = vmatprep.subr.mxu0 %v1119
        %1378 = vmatpush1.msra.mxu0 %v1118
        %1379 = vmatprep.subr.mxu0 %v1123
        %1380 = vmatpush1.msra.mxu0 %v1122
        %1381 = vmatprep.subr.mxu0 %v1127
        %1382 = vmatpush1.msra.mxu0 %v1126
        %1383 = vmatprep.subr.mxu0 %v1131
        %1384 = vmatpush1.msra.mxu0 %v1130
        %1385 = vmatprep.subr.mxu0 %v1135
        %1386 = vmatpush1.msra.mxu0 %v1134
        %1387 = vmatprep.subr.mxu0 %v1139
        %1388 = vmatpush1.msra.mxu0 %v1138
        %1389 = vmatprep.subr.mxu0 %v1143
        %1390 = vmatpush1.msra.mxu0 %v1142
        %1391 = vmatprep.subr.mxu0 %v1147
        %1392 = vmatpush1.msra.mxu0 %v1146
        %1393 = vmatprep.subr.mxu0 %v1151
        %1394 = vmatpush1.msra.mxu0 %v1150
        %1395 = vmatprep.subr.mxu0 %v1155
        %1396 = vmatpush1.msra.mxu0 %v1154
        %1397 = vmatprep.subr.mxu0 %v1159
        %1398 = vmatpush1.msra.mxu0 %v1158
        %1399 = vmatprep.subr.mxu0 %v1163
        %1400 = vmatpush1.msra.mxu0 %v1162
        %1401 = vmatprep.subr.mxu0 %v1167
        %1402 = vmatpush1.msra.mxu0 %v1166
        %1403 = vmatprep.subr.mxu0 %v1171
        %1404 = vmatpush1.msra.mxu0 %v1170
        %1405 = vmatprep.subr.mxu0 %v1175
        %1406 = vmatpush1.msra.mxu0 %v1174
        %1407 = vmatprep.subr.mxu0 %v1179
        %1408 = vmatpush1.msra.mxu0 %v1178
        %1409 = vmatprep.subr.mxu0 %v1183
        %1410 = vmatpush1.msra.mxu0 %v1182
        %1411 = vmatprep.subr.mxu0 %v1187
        %1412 = vmatpush1.msra.mxu0 %v1186
        %1413 = vmatprep.subr.mxu0 %v1191
        %1414 = vmatpush1.msra.mxu0 %v1190
        %1415 = vmatprep.subr.mxu0 %v1195
        %1416 = vmatpush1.msra.mxu0 %v1194
        %1417 = vmatprep.subr.mxu0 %v1199
        %1418 = vmatpush1.msra.mxu0 %v1198
        %1419 = vmatprep.subr.mxu0 %v1203
        %1420 = vmatpush1.msra.mxu0 %v1202
        %1421 = vmatprep.subr.mxu0 %v1207
        %1422 = vmatpush1.msra.mxu0 %v1206
        %1423 = vmatprep.mubr.f32.mxu0 %v1079
        %1424 = vmatmul.mubr.f32.gmra.mrb[0].mxu0 %v1078
        %v1425 = vpop.f32.mrb[0].mxu0
        %v1426 = vadd.f32 %v1342, %v1425
        %v1427 = vpop.f32.mrb[0].mxu0
        %v1428 = vadd.f32 %v1346, %v1427
        %1429 = vdwg.mxu0
        %1430 = vmatprep.subr.mxu0 %v1211
        %1431 = vmatpush1.msra.mxu0 %v1210
        %1432 = vmatprep.subr.mxu0 %v1215
        %1433 = vmatpush1.msra.mxu0 %v1214
        %1434 = vmatprep.subr.mxu0 %v1219
        %1435 = vmatpush1.msra.mxu0 %v1218
        %1436 = vmatprep.subr.mxu0 %v1223
        %1437 = vmatpush1.msra.mxu0 %v1222
        %1438 = vmatprep.subr.mxu0 %v1227
        %1439 = vmatpush1.msra.mxu0 %v1226
        %1440 = vmatprep.subr.mxu0 %v1231
        %1441 = vmatpush1.msra.mxu0 %v1230
        %1442 = vmatprep.subr.mxu0 %v1235
        %1443 = vmatpush1.msra.mxu0 %v1234
        %1444 = vmatprep.subr.mxu0 %v1239
        %1445 = vmatpush1.msra.mxu0 %v1238
        %1446 = vmatprep.subr.mxu0 %v1243
        %1447 = vmatpush1.msra.mxu0 %v1242
        %1448 = vmatprep.subr.mxu0 %v1247
        %1449 = vmatpush1.msra.mxu0 %v1246
        %1450 = vmatprep.subr.mxu0 %v1251
        %1451 = vmatpush1.msra.mxu0 %v1250
        %1452 = vmatprep.subr.mxu0 %v1255
        %1453 = vmatpush1.msra.mxu0 %v1254
        %1454 = vmatprep.subr.mxu0 %v1259
        %1455 = vmatpush1.msra.mxu0 %v1258
        %1456 = vmatprep.subr.mxu0 %v1263
        %1457 = vmatpush1.msra.mxu0 %v1262
        %1458 = vmatprep.subr.mxu0 %v1267
        %1459 = vmatpush1.msra.mxu0 %v1266
        %1460 = vmatprep.subr.mxu0 %v1271
        %1461 = vmatpush1.msra.mxu0 %v1270
        %1462 = vmatprep.subr.mxu0 %v1275
        %1463 = vmatpush1.msra.mxu0 %v1274
        %1464 = vmatprep.subr.mxu0 %v1279
        %1465 = vmatpush1.msra.mxu0 %v1278
        %1466 = vmatprep.subr.mxu0 %v1283
        %1467 = vmatpush1.msra.mxu0 %v1282
        %1468 = vmatprep.subr.mxu0 %v1287
        %1469 = vmatpush1.msra.mxu0 %v1286
        %1470 = vmatprep.subr.mxu0 %v1291
        %1471 = vmatpush1.msra.mxu0 %v1290
        %1472 = vmatprep.subr.mxu0 %v1295
        %1473 = vmatpush1.msra.mxu0 %v1294
        %1474 = vmatprep.subr.mxu0 %v1299
        %1475 = vmatpush1.msra.mxu0 %v1298
        %1476 = vmatprep.subr.mxu0 %v1303
        %1477 = vmatpush1.msra.mxu0 %v1302
        %1478 = vmatprep.subr.mxu0 %v1307
        %1479 = vmatpush1.msra.mxu0 %v1306
        %1480 = vmatprep.subr.mxu0 %v1311
        %1481 = vmatpush1.msra.mxu0 %v1310
        %1482 = vmatprep.subr.mxu0 %v1315
        %1483 = vmatpush1.msra.mxu0 %v1314
        %1484 = vmatprep.subr.mxu0 %v1319
        %1485 = vmatpush1.msra.mxu0 %v1318
        %1486 = vmatprep.subr.mxu0 %v1323
        %1487 = vmatpush1.msra.mxu0 %v1322
        %1488 = vmatprep.subr.mxu0 %v1327
        %1489 = vmatpush1.msra.mxu0 %v1326
        %1490 = vmatprep.subr.mxu0 %v1331
        %1491 = vmatpush1.msra.mxu0 %v1330
        %1492 = vmatprep.subr.mxu0 %v1335
        %1493 = vmatpush1.msra.mxu0 %v1334
        %1494 = vmatprep.mubr.f32.mxu0 %v1081
        %1495 = vmatmul.mubr.f32.gmra.mrb[0].mxu0 %v1080
        %v1496 = vpop.f32.mrb[0].mxu0
        %v1497 = vadd.f32 %v1426, %v1496
        %v1498 = vpop.f32.mrb[0].mxu0
        %v1499 = vadd.f32 %v1428, %v1498
        %1500 = vdwg.mxu0
        %1501 = vmatprep.subr.mxu0 %v1085
        %1502 = vmatpush1.msra.mxu0 %v1084
        %1503 = vmatprep.subr.mxu0 %v1089
        %1504 = vmatpush1.msra.mxu0 %v1088
        %1505 = vmatprep.subr.mxu0 %v1093
        %1506 = vmatpush1.msra.mxu0 %v1092
        %1507 = vmatprep.subr.mxu0 %v1097
        %1508 = vmatpush1.msra.mxu0 %v1096
        %1509 = vmatprep.subr.mxu0 %v1101
        %1510 = vmatpush1.msra.mxu0 %v1100
        %1511 = vmatprep.subr.mxu0 %v1105
        %1512 = vmatpush1.msra.mxu0 %v1104
        %1513 = vmatprep.subr.mxu0 %v1109
        %1514 = vmatpush1.msra.mxu0 %v1108
        %1515 = vmatprep.subr.mxu0 %v1113
        %1516 = vmatpush1.msra.mxu0 %v1112
        %1517 = vmatprep.subr.mxu0 %v1117
        %1518 = vmatpush1.msra.mxu0 %v1116
        %1519 = vmatprep.subr.mxu0 %v1121
        %1520 = vmatpush1.msra.mxu0 %v1120
        %1521 = vmatprep.subr.mxu0 %v1125
        %1522 = vmatpush1.msra.mxu0 %v1124
        %1523 = vmatprep.subr.mxu0 %v1129
        %1524 = vmatpush1.msra.mxu0 %v1128
        %1525 = vmatprep.subr.mxu0 %v1133
        %1526 = vmatpush1.msra.mxu0 %v1132
        %1527 = vmatprep.subr.mxu0 %v1137
        %1528 = vmatpush1.msra.mxu0 %v1136
        %1529 = vmatprep.subr.mxu0 %v1141
        %1530 = vmatpush1.msra.mxu0 %v1140
        %1531 = vmatprep.subr.mxu0 %v1145
        %1532 = vmatpush1.msra.mxu0 %v1144
        %1533 = vmatprep.subr.mxu0 %v1149
        %1534 = vmatpush1.msra.mxu0 %v1148
        %1535 = vmatprep.subr.mxu0 %v1153
        %1536 = vmatpush1.msra.mxu0 %v1152
        %1537 = vmatprep.subr.mxu0 %v1157
        %1538 = vmatpush1.msra.mxu0 %v1156
        %1539 = vmatprep.subr.mxu0 %v1161
        %1540 = vmatpush1.msra.mxu0 %v1160
        %1541 = vmatprep.subr.mxu0 %v1165
        %1542 = vmatpush1.msra.mxu0 %v1164
        %1543 = vmatprep.subr.mxu0 %v1169
        %1544 = vmatpush1.msra.mxu0 %v1168
        %1545 = vmatprep.subr.mxu0 %v1173
        %1546 = vmatpush1.msra.mxu0 %v1172
        %1547 = vmatprep.subr.mxu0 %v1177
        %1548 = vmatpush1.msra.mxu0 %v1176
        %1549 = vmatprep.subr.mxu0 %v1181
        %1550 = vmatpush1.msra.mxu0 %v1180
        %1551 = vmatprep.subr.mxu0 %v1185
        %1552 = vmatpush1.msra.mxu0 %v1184
        %1553 = vmatprep.subr.mxu0 %v1189
        %1554 = vmatpush1.msra.mxu0 %v1188
        %1555 = vmatprep.subr.mxu0 %v1193
        %1556 = vmatpush1.msra.mxu0 %v1192
        %1557 = vmatprep.subr.mxu0 %v1197
        %1558 = vmatpush1.msra.mxu0 %v1196
        %1559 = vmatprep.subr.mxu0 %v1201
        %1560 = vmatpush1.msra.mxu0 %v1200
        %1561 = vmatprep.subr.mxu0 %v1205
        %1562 = vmatpush1.msra.mxu0 %v1204
        %1563 = vmatprep.subr.mxu0 %v1209
        %1564 = vmatpush1.msra.mxu0 %v1208
        %1565 = vmatprep.mubr.f32.mxu0 %v1079
        %1566 = vmatmul.mubr.f32.gmra.mrb[0].mxu0 %v1078
        %v1567 = vpop.f32.mrb[0].mxu0
        %v1568 = vadd.f32 %v1350, %v1567
        %v1569 = vpop.f32.mrb[0].mxu0
        %v1570 = vadd.f32 %v1354, %v1569
        %1571 = vdwg.mxu0
        %1572 = vmatprep.subr.mxu0 %v1213
        %1573 = vmatpush1.msra.mxu0 %v1212
        %1574 = vmatprep.subr.mxu0 %v1217
        %1575 = vmatpush1.msra.mxu0 %v1216
        %1576 = vmatprep.subr.mxu0 %v1221
        %1577 = vmatpush1.msra.mxu0 %v1220
        %1578 = vmatprep.subr.mxu0 %v1225
        %1579 = vmatpush1.msra.mxu0 %v1224
        %1580 = vmatprep.subr.mxu0 %v1229
        %1581 = vmatpush1.msra.mxu0 %v1228
        %1582 = vmatprep.subr.mxu0 %v1233
        %1583 = vmatpush1.msra.mxu0 %v1232
        %1584 = vmatprep.subr.mxu0 %v1237
        %1585 = vmatpush1.msra.mxu0 %v1236
        %1586 = vmatprep.subr.mxu0 %v1241
        %1587 = vmatpush1.msra.mxu0 %v1240
        %1588 = vmatprep.subr.mxu0 %v1245
        %1589 = vmatpush1.msra.mxu0 %v1244
        %1590 = vmatprep.subr.mxu0 %v1249
        %1591 = vmatpush1.msra.mxu0 %v1248
        %1592 = vmatprep.subr.mxu0 %v1253
        %1593 = vmatpush1.msra.mxu0 %v1252
        %1594 = vmatprep.subr.mxu0 %v1257
        %1595 = vmatpush1.msra.mxu0 %v1256
        %1596 = vmatprep.subr.mxu0 %v1261
        %1597 = vmatpush1.msra.mxu0 %v1260
        %1598 = vmatprep.subr.mxu0 %v1265
        %1599 = vmatpush1.msra.mxu0 %v1264
        %1600 = vmatprep.subr.mxu0 %v1269
        %1601 = vmatpush1.msra.mxu0 %v1268
        %1602 = vmatprep.subr.mxu0 %v1273
        %1603 = vmatpush1.msra.mxu0 %v1272
        %1604 = vmatprep.subr.mxu0 %v1277
        %1605 = vmatpush1.msra.mxu0 %v1276
        %1606 = vmatprep.subr.mxu0 %v1281
        %1607 = vmatpush1.msra.mxu0 %v1280
        %1608 = vmatprep.subr.mxu0 %v1285
        %1609 = vmatpush1.msra.mxu0 %v1284
        %1610 = vmatprep.subr.mxu0 %v1289
        %1611 = vmatpush1.msra.mxu0 %v1288
        %1612 = vmatprep.subr.mxu0 %v1293
        %1613 = vmatpush1.msra.mxu0 %v1292
        %1614 = vmatprep.subr.mxu0 %v1297
        %1615 = vmatpush1.msra.mxu0 %v1296
        %1616 = vmatprep.subr.mxu0 %v1301
        %1617 = vmatpush1.msra.mxu0 %v1300
        %1618 = vmatprep.subr.mxu0 %v1305
        %1619 = vmatpush1.msra.mxu0 %v1304
        %1620 = vmatprep.subr.mxu0 %v1309
        %1621 = vmatpush1.msra.mxu0 %v1308
        %1622 = vmatprep.subr.mxu0 %v1313
        %1623 = vmatpush1.msra.mxu0 %v1312
        %1624 = vmatprep.subr.mxu0 %v1317
        %1625 = vmatpush1.msra.mxu0 %v1316
        %1626 = vmatprep.subr.mxu0 %v1321
        %1627 = vmatpush1.msra.mxu0 %v1320
        %1628 = vmatprep.subr.mxu0 %v1325
        %1629 = vmatpush1.msra.mxu0 %v1324
        %1630 = vmatprep.subr.mxu0 %v1329
        %1631 = vmatpush1.msra.mxu0 %v1328
        %1632 = vmatprep.subr.mxu0 %v1333
        %1633 = vmatpush1.msra.mxu0 %v1332
        %1634 = vmatprep.subr.mxu0 %v1337
        %1635 = vmatpush1.msra.mxu0 %v1336
        %1636 = vmatprep.mubr.f32.mxu0 %v1081
        %1637 = vmatmul.mubr.f32.gmra.mrb[0].mxu0 %v1080
        %v1638 = vpop.f32.mrb[0].mxu0
        %v1639 = vadd.f32 %v1568, %v1638
        %v1640 = vpop.f32.mrb[0].mxu0
        %v1641 = vadd.f32 %v1570, %v1640
        %1642 = vdwg.mxu0
        %v1643 = vmax.f32 %v1497, 0.0
        %v1644 = vmax.f32 %v1499, 0.0
        %v1645 = vmax.f32 %v1639, 0.0
        %v1646 = vmax.f32 %v1641, 0.0
        %v1647 = vadd.f32 %v1643, %v455
        %v1648 = vadd.f32 %v1644, %v456
        %v1649 = vadd.f32 %v1645, %v457
        %v1650 = vadd.f32 %v1646, %v458
        %1651 = vst [vmem:[%s446] sm:$0xff] %v1647
        %1652 = vst [vmem:[%s446 + $0x8] sm:$0xff] %v1648
        %1653 = vst [vmem:[%s446 + $0x10] sm:$0xff] %v1649
        %1654 = vst [vmem:[%s446 + $0x18] sm:$0xff] %v1650
        %s1655 = sand.u32 %s234, 1
        %s1656 = scalar_lea.sflag [#allocation4], %s1655
        %s1657 = sand.u32 %s234, 1
        %s1658 = smul.addr %s1657, 32
        %s1659 = scalar_lea.vmem [#allocation11], %s1658
        // Predicated region
        $region69: #{tpu_custom_call.1} parent=47 // pred_check
          %p1660 = pneg %p244
        $region70: #{tpu_custom_call.1} parent=47 // pred_check_branch
          %1662 = sbr.rel (%p1660) target = $region72
        $region71: #{tpu_custom_call.1} parent=47 // pred_region
          %s1664 = ssub.s32 512, 512
          %1665 = vsyncadd %s1656, %s1664
          %s1666 = smul.addr %s33, 4
          %s1667 = smul.addr %s32, 8
          %s1668 = sadd.s32 %s1666, %s1667
          %s1669 = smul.addr %s1668, 128
          %s1670 = scalar_lea.hbm %s7, %s1669
          %s1672 = sshll.u32 %s1659, 4
          %s1673 = int_to_ptr.vmem [resolvable:$true] %s1672
          %1675 = dma.vmem_to_hbm [thread:$0]  %s1673, 512, %s1670, %s1656
        $region72: #{tpu_custom_call.1} parent=47 // pred_fallthru
          _
      $region48: #{tpu_custom_call.1} parent=5 // pred_fallthru
        _
      %p1676 = scmp.le.s32.totalorder 2, %s23
      // Predicated region
      $region73: #{tpu_custom_call.1} parent=5 // pred_check
        %p1677 = pneg %p1676
      $region74: #{tpu_custom_call.1} parent=5 // pred_check_branch
        %1679 = sbr.rel (%p1677) target = $region76
      $region75: #{tpu_custom_call.1} parent=5 // pred_region
        %s1680 = ssub.s32 %s23, 2
        // Predicated region
        $region77: #{tpu_custom_call.1} parent=75 // pred_check
          %p1681 = pneg %p250
        $region78: #{tpu_custom_call.1} parent=75 // pred_check_branch
          %1683 = sbr.rel (%p1681) target = $region80
        $region79: #{tpu_custom_call.1} parent=75 // pred_region
          %s1684 = sand.u32 %s235, 1
          %s1685 = scalar_lea.sflag [#allocation4], %s1684
          %s1686 = sand.u32 %s235, 1
          %s1687 = smul.addr %s1686, 32
          %s1688 = scalar_lea.vmem [#allocation11], %s1687
          %1689 = dma.done %s1685, 512
        $region80: #{tpu_custom_call.1} parent=75 // pred_fallthru
          _
      $region76: #{tpu_custom_call.1} parent=5 // pred_fallthru
        _
    $region6: #{tpu_custom_call.1} parent=1 // loop_footer
      %s27 = sadd.s32 1, %s23
    $region7: #{tpu_custom_call.1} parent=1 // loop_footer_branch
      %22 = sbr.rel target = $region3
    $region8: #{tpu_custom_call.1} parent=1 // loop_exit
      _
    %1690 = vsyncpa [#allocation3], 1
    %s1691 = scalar_lea.sflag [#allocation3], 1
    %1692 = vsyncpa %s1691, 1
    %1693 = vsyncpa [#allocation6], 1
    %s1694 = scalar_lea.sflag [#allocation6], 1
    %1695 = vsyncpa %s1694, 1
    %1696 = vsyncpa [#allocation9], 1
    %1697 = vsyncpa [#allocation4], 1
    %s1698 = scalar_lea.sflag [#allocation4], 1
    %1699 = vsyncpa %s1698, 1

</llo_original>
